<compile_context>
chip_gen: v5e
topology: v5e:2x2
jax: 0.10.0
libtpu: 0.0.40
codegen_flags: <defaults>
</compile_context>

<pallas_src>
import functools

import jax
import jax.numpy as jnp
import numpy as np
from jax.experimental import pallas as pl
from jax.experimental.pallas import tpu as pltpu

_HIGHEST = jax.lax.Precision.HIGHEST


# ---------------------------------------------------------------------------
# Tiling / spec helpers
# ---------------------------------------------------------------------------
def _row_tile(m, requested):
    """Sublane-aligned row tile, capped at ceil(m/2) so the row grid has >= 2
    steps (keeps both v7x TensorCores busy under "parallel" semantics)."""
    if m <= 8:
        return m
    cap = ((pl.cdiv(m, 2) + 7) // 8) * 8
    t = min(requested, cap, m)
    return max(8, (t // 8) * 8)


def _col_tile(n, requested=512):
    """Lane tile for the decoder output: multiple of 128 (or the full width)."""
    if n <= 128:
        return n
    t = min(requested, n)
    return max(128, (t // 128) * 128)


def _resident_spec(block_shape, index_map):
    """BlockSpec for a grid-invariant operand: single-buffered (it never changes
    across grid steps), reclaiming VMEM headroom for the big adj / output tiles."""
    try:
        return pl.BlockSpec(block_shape, index_map, pipeline_mode=pl.Buffered(1))
    except Exception:  # older jax without pipeline_mode — fall back to default
        return pl.BlockSpec(block_shape, index_map)


def _compiler_params(n_parallel_axes, buffer_bytes):
    """Explicit scoped-VMEM limit sized from the actual buffers (mandatory for
    large graphs under v5e's 16 MiB default and v7x's 64 MiB physical VMEM)."""
    limit = int(min(max(2 * buffer_bytes + (4 << 20), 32 << 20), 100 << 20))
    return pltpu.CompilerParams(
        dimension_semantics=("parallel",) * n_parallel_axes,
        vmem_limit_bytes=limit,
    )


# ---------------------------------------------------------------------------
# Kernel 1: hidden = relu(adj @ xw)        (adj row-tiled, xw resident)
# ---------------------------------------------------------------------------
def _propagate_kernel(adj_ref, xw_ref, o_ref):
    h = jnp.dot(adj_ref[...], xw_ref[...], preferred_element_type=jnp.float32)
    o_ref[...] = jnp.maximum(h, 0.0).astype(o_ref.dtype)


def gcn_propagate_relu(adj, xw, *, tile_m=256):
    M, K = adj.shape
    Kx, d_out = xw.shape
    assert K == Kx
    tm = _row_tile(M, tile_m)
    grid = (pl.cdiv(M, tm),)
    isz = adj.dtype.itemsize
    vmem = 2 * tm * K * isz + K * d_out * xw.dtype.itemsize + 2 * tm * d_out * 4
    return pl.pallas_call(
        _propagate_kernel,
        out_shape=jax.ShapeDtypeStruct((M, d_out), jnp.float32),
        grid_spec=pltpu.PrefetchScalarGridSpec(
            num_scalar_prefetch=0,
            grid=grid,
            in_specs=[
                pl.BlockSpec((tm, K), lambda i: (i, 0)),           # adj row tile
                _resident_spec((K, d_out), lambda i: (0, 0)),      # xw (resident)
            ],
            out_specs=pl.BlockSpec((tm, d_out), lambda i: (i, 0)),
        ),
        compiler_params=_compiler_params(1, vmem),
    )(adj, xw)


# ---------------------------------------------------------------------------
# Kernel 2: fused  hidden2 = relu(adj @ rhs[:, :H])
#                  Z1      = noise * exp(adj @ rhs[:, H+L:]) + adj @ rhs[:, H:H+L]
#                  Z1_dec  = (Z1 * I_pq_sign) in the decoder MXU dtype
# One adj stream, one 128-lane MXU dot, sign flip folded into the store.
# ---------------------------------------------------------------------------
def _fused_hidden_reparam_kernel(adj_ref, rhs_ref, noise_ref,
                                 hid_ref, z_ref, zdec_ref,
                                 *, d_hidden, latent, grdpg_q):
    res = jnp.dot(adj_ref[...], rhs_ref[...], preferred_element_type=jnp.float32)
    hid_ref[...] = jnp.maximum(res[:, :d_hidden], 0.0).astype(hid_ref.dtype)
    mean = res[:, d_hidden:d_hidden + latent]
    logstd = res[:, d_hidden + latent:d_hidden + 2 * latent]
    z = noise_ref[...] * jnp.exp(logstd) + mean
    z_ref[...] = z.astype(z_ref.dtype)
    if grdpg_q > 0:   # I_pq: negate the last q latent columns (decoder copy only)
        col = jax.lax.broadcasted_iota(jnp.int32, (1, latent), 1)
        z_dec = jnp.where(col >= latent - grdpg_q, -z, z)
    else:
        z_dec = z
    zdec_ref[...] = z_dec.astype(zdec_ref.dtype)


def gcn_fused_hidden_reparam(adj, rhs, noise, *, d_hidden, latent, grdpg_q,
                             dec_dtype, tile_m=256):
    M, K = adj.shape
    Kr, d_rhs = rhs.shape
    assert Kr == K and d_rhs == d_hidden + 2 * latent
    assert noise.shape == (M, latent)
    tm = _row_tile(M, tile_m)
    grid = (pl.cdiv(M, tm),)
    isz = adj.dtype.itemsize
    vmem = (2 * tm * K * isz + K * d_rhs * rhs.dtype.itemsize
            + 2 * tm * latent * 4 + 2 * tm * d_hidden * 4
            + 2 * tm * latent * 4 + 2 * tm * latent * jnp.dtype(dec_dtype).itemsize)
    kernel = functools.partial(_fused_hidden_reparam_kernel,
                               d_hidden=d_hidden, latent=latent, grdpg_q=grdpg_q)
    return pl.pallas_call(
        kernel,
        out_shape=(jax.ShapeDtypeStruct((M, d_hidden), jnp.float32),
                   jax.ShapeDtypeStruct((M, latent), jnp.float32),
                   jax.ShapeDtypeStruct((M, latent), dec_dtype)),
        grid_spec=pltpu.PrefetchScalarGridSpec(
            num_scalar_prefetch=0,
            grid=grid,
            in_specs=[
                pl.BlockSpec((tm, K), lambda i: (i, 0)),            # adj row tile
                _resident_spec((K, d_rhs), lambda i: (0, 0)),       # [xw2|xw_m1|xw_s1]
                pl.BlockSpec((tm, latent), lambda i: (i, 0)),       # noise row tile
            ],
            out_specs=[
                pl.BlockSpec((tm, d_hidden), lambda i: (i, 0)),
                pl.BlockSpec((tm, latent), lambda i: (i, 0)),
                pl.BlockSpec((tm, latent), lambda i: (i, 0)),
            ],
        ),
        compiler_params=_compiler_params(1, vmem),
    )(adj, rhs, noise)


# ---------------------------------------------------------------------------
# Kernel 3: Z = noise * exp(adj @ rhs[:, L:]) + adj @ rhs[:, :L]
#           (rhs = [xw_mean | xw_logstd] concatenated -> one MXU dot)
# ---------------------------------------------------------------------------
def _reparam_kernel(adj_ref, rhs_ref, noise_ref, z_ref, zdec_ref, *, latent):
    res = jnp.dot(adj_ref[...], rhs_ref[...], preferred_element_type=jnp.float32)
    mean = res[:, :latent]
    logstd = res[:, latent:2 * latent]
    z = noise_ref[...] * jnp.exp(logstd) + mean
    z_ref[...] = z.astype(z_ref.dtype)
    zdec_ref[...] = z.astype(zdec_ref.dtype)


def gcn_reparam(adj, rhs, noise, *, latent, dec_dtype, tile_m=256):
    M, K = adj.shape
    Kr, d_rhs = rhs.shape
    assert Kr == K and d_rhs == 2 * latent
    assert noise.shape == (M, latent)
    tm = _row_tile(M, tile_m)
    grid = (pl.cdiv(M, tm),)
    isz = adj.dtype.itemsize
    vmem = (2 * tm * K * isz + K * d_rhs * rhs.dtype.itemsize
            + 2 * tm * latent * 4 + 2 * tm * latent * 4
            + 2 * tm * latent * jnp.dtype(dec_dtype).itemsize)
    kernel = functools.partial(_reparam_kernel, latent=latent)
    return pl.pallas_call(
        kernel,
        out_shape=(jax.ShapeDtypeStruct((M, latent), jnp.float32),
                   jax.ShapeDtypeStruct((M, latent), dec_dtype)),
        grid_spec=pltpu.PrefetchScalarGridSpec(
            num_scalar_prefetch=0,
            grid=grid,
            in_specs=[
                pl.BlockSpec((tm, K), lambda i: (i, 0)),            # adj row tile
                _resident_spec((K, d_rhs), lambda i: (0, 0)),       # [xw_m | xw_s]
                pl.BlockSpec((tm, latent), lambda i: (i, 0)),       # noise row tile
            ],
            out_specs=[
                pl.BlockSpec((tm, latent), lambda i: (i, 0)),
                pl.BlockSpec((tm, latent), lambda i: (i, 0)),
            ],
        ),
        compiler_params=_compiler_params(1, vmem),
    )(adj, rhs, noise)


# ---------------------------------------------------------------------------
# Kernel 4: decoder  A_pred = sigmoid(Z1_dec @ Z2_dec.T)
# 2-D (row, col) grid; sign flip already folded into Z1_dec; bf16-output capable.
# ---------------------------------------------------------------------------
def _decode_kernel(z1_ref, z2_ref, o_ref):
    logits = jax.lax.dot_general(
        z1_ref[...], z2_ref[...],
        dimension_numbers=(((1,), (1,)), ((), ())),   # Z1 @ Z2.T
        preferred_element_type=jnp.float32)
    o_ref[...] = jax.nn.sigmoid(logits).astype(o_ref.dtype)


def grdpg_decode(z1_dec, z2_dec, *, out_dtype=jnp.float32, tile_m=256, tile_n=512):
    N1, latent = z1_dec.shape
    N2, latent2 = z2_dec.shape
    assert latent == latent2
    tm = _row_tile(N1, tile_m)
    tn = _col_tile(N2, tile_n)
    grid = (pl.cdiv(N1, tm), pl.cdiv(N2, tn))
    isz = z1_dec.dtype.itemsize
    vmem = (2 * tm * latent * isz + 2 * tn * latent * isz
            + 2 * tm * tn * jnp.dtype(out_dtype).itemsize)
    return pl.pallas_call(
        _decode_kernel,
        out_shape=jax.ShapeDtypeStruct((N1, N2), out_dtype),
        grid_spec=pltpu.PrefetchScalarGridSpec(
            num_scalar_prefetch=0,
            grid=grid,
            in_specs=[
                pl.BlockSpec((tm, latent), lambda i, j: (i, 0)),    # Z1 row tile
                pl.BlockSpec((tn, latent), lambda i, j: (j, 0)),    # Z2 col tile
            ],
            out_specs=pl.BlockSpec((tm, tn), lambda i, j: (i, j)),
        ),
        compiler_params=_compiler_params(2, vmem),
    )(z1_dec, z2_dec)


# ---------------------------------------------------------------------------
# Full VBGAE_adj forward
# ---------------------------------------------------------------------------
def vbgae_adj_forward(X1, X2, adj, params, noise1, noise2, *, grdpg_q=0,
                      tile_m=256, mxu_dtype=jnp.bfloat16,
                      decode_out_dtype=jnp.float32):
    latent = params["w_mean1"].shape[1]
    d_h2 = params["w_base2"].shape[1]

    # Cast adj to the MXU dtype once; one (half-width) transpose reused by both
    # adj.T stages — no per-call casts or repeated f32 transposes in HBM.
    adj_c = adj.astype(mxu_dtype)
    adj_t_c = adj_c.T

    # ---- stage A: hidden1 = relu(adj.T @ (X1 @ Wb1))                (N2, H1)
    xw1 = jnp.dot(X1, params["w_base1"], precision=_HIGHEST).astype(mxu_dtype)
    hidden1 = gcn_propagate_relu(adj_t_c, xw1, tile_m=tile_m)

    # ---- stage B (fused, single adj stream over N1 rows):
    #      hidden2 = relu(adj @ (X2 @ Wb2)),  Z1 = reparam(adj, hidden1@[Wm1|Ws1])
    xw2 = jnp.dot(X2, params["w_base2"], precision=_HIGHEST)
    w_ms1 = jnp.concatenate([params["w_mean1"], params["w_logstd1"]], axis=1)
    xw_ms1 = jnp.dot(hidden1, w_ms1, precision=_HIGHEST)
    rhs_b = jnp.concatenate([xw2, xw_ms1], axis=1).astype(mxu_dtype)  # (N2, H2+2L)
    hidden2, z1, z1_dec = gcn_fused_hidden_reparam(
        adj_c, rhs_b, noise1, d_hidden=d_h2, latent=latent,
        grdpg_q=grdpg_q, dec_dtype=mxu_dtype, tile_m=tile_m)

    # ---- stage C: Z2 = reparam(adj.T, hidden2 @ [Wm2|Ws2])          (N2, L)
    w_ms2 = jnp.concatenate([params["w_mean2"], params["w_logstd2"]], axis=1)
    xw_ms2 = jnp.dot(hidden2, w_ms2, precision=_HIGHEST).astype(mxu_dtype)
    z2, z2_dec = gcn_reparam(adj_t_c, xw_ms2, noise2, latent=latent,
                             dec_dtype=mxu_dtype, tile_m=tile_m)

    # ---- stage D: A_pred = sigmoid((Z1 @ I_pq) @ Z2.T)              (N1, N2)
    a_pred = grdpg_decode(z1_dec, z2_dec, out_dtype=decode_out_dtype,
                          tile_m=tile_m)
    return a_pred, z1, z2


# ---------------------------------------------------------------------------
# Pure-JAX reference (f32, highest matmul precision)
# ---------------------------------------------------------------------------
def reference_forward(X1, X2, adj, params, noise1, noise2, *, grdpg_q=0):
    def gcn(x, w, a, relu):
        h = jnp.dot(a, jnp.dot(x, w, precision=_HIGHEST), precision=_HIGHEST)
        return jnp.maximum(h, 0.0) if relu else h

    adj_t = adj.T
    hidden1 = gcn(X1, params["w_base1"], adj_t, True)
    mean1 = gcn(hidden1, params["w_mean1"], adj, False)
    logstd1 = gcn(hidden1, params["w_logstd1"], adj, False)
    z1 = noise1 * jnp.exp(logstd1) + mean1

    hidden2 = gcn(X2, params["w_base2"], adj, True)
    mean2 = gcn(hidden2, params["w_mean2"], adj_t, False)
    logstd2 = gcn(hidden2, params["w_logstd2"], adj_t, False)
    z2 = noise2 * jnp.exp(logstd2) + mean2

    latent = z1.shape[1]
    sign = np.ones((latent,), np.float32)
    if grdpg_q > 0:
        sign[latent - grdpg_q:] = -1.0
    logits = jnp.dot(z1 * sign[None, :], z2.T, precision=_HIGHEST)
    return jax.nn.sigmoid(logits), z1, z2


def glorot_init(key, input_dim, output_dim):
    init_range = np.sqrt(6.0 / (input_dim + output_dim))
    u = jax.random.uniform(key, (input_dim, output_dim), dtype=jnp.float32)
    return u * 2.0 * init_range - init_range


if __name__ == "__main__":
    # Small bipartite graph; N2 is deliberately not a multiple of the tile so
    # the cdiv / partial-tile path is exercised.
    N1, N2 = 256, 192
    D_IN1, D_IN2 = 96, 80
    H1, H2 = 64, 64            # hidden1_dim1 / hidden1_dim2
    LATENT = 32                # hidden2_dim (latent_dim)
    GRDPG_Q = 1

    key = jax.random.PRNGKey(0)
    (k_x1, k_x2, k_adj, k_wb1, k_wm1, k_ws1, k_wb2, k_wm2, k_ws2,
     k_n1, k_n2) = jax.random.split(key, 11)

    X1 = jax.random.normal(k_x1, (N1, D_IN1), dtype=jnp.float32)
    X2 = jax.random.normal(k_x2, (N2, D_IN2), dtype=jnp.float32)

    # Synthetic sparse-ish bipartite adjacency, symmetric degree normalization.
    a_mask = (jax.random.uniform(k_adj, (N1, N2)) < 0.08).astype(jnp.float32)
    deg1 = jnp.maximum(a_mask.sum(axis=1, keepdims=True), 1.0)
    deg2 = jnp.maximum(a_mask.sum(axis=0, keepdims=True), 1.0)
    adj = a_mask / jnp.sqrt(deg1) / jnp.sqrt(deg2)

    params = {
        "w_base1":   glorot_init(k_wb1, D_IN1, H1),
        "w_mean1":   glorot_init(k_wm1, H1, LATENT),
        "w_logstd1": glorot_init(k_ws1, H1, LATENT),
        "w_base2":   glorot_init(k_wb2, D_IN2, H2),
        "w_mean2":   glorot_init(k_wm2, H2, LATENT),
        "w_logstd2": glorot_init(k_ws2, H2, LATENT),
    }
    # torch.randn inside forward -> explicit noise passed in for determinism.
    noise1 = jax.random.normal(k_n1, (N1, LATENT), dtype=jnp.float32)
    noise2 = jax.random.normal(k_n2, (N2, LATENT), dtype=jnp.float32)

    fwd_f32 = jax.jit(functools.partial(
        vbgae_adj_forward, grdpg_q=GRDPG_Q, tile_m=256,
        mxu_dtype=jnp.float32, decode_out_dtype=jnp.float32))
    fwd_perf = jax.jit(functools.partial(
        vbgae_adj_forward, grdpg_q=GRDPG_Q, tile_m=256,
        mxu_dtype=jnp.bfloat16, decode_out_dtype=jnp.bfloat16))

    a_ref, z1_ref, z2_ref = reference_forward(
        X1, X2, adj, params, noise1, noise2, grdpg_q=GRDPG_Q)

    # 1) f32 MXU path: tight numerical validation of the kernels.
    a32, z1_32, z2_32 = jax.block_until_ready(
        fwd_f32(X1, X2, adj, params, noise1, noise2))
    np.testing.assert_allclose(np.asarray(z1_32), np.asarray(z1_ref),
                               rtol=2e-3, atol=2e-3)
    np.testing.assert_allclose(np.asarray(z2_32), np.asarray(z2_ref),
                               rtol=2e-3, atol=2e-3)
    np.testing.assert_allclose(np.asarray(a32), np.asarray(a_ref),
                               rtol=2e-3, atol=2e-3)

    # 2) Performance configuration (bf16 MXU operands, bf16 decoder output):
    #    looser validation — bf16 feeds exp(logstd), so errors are multiplicative,
    #    and sigmoid may legitimately saturate to exactly 0/1 for large logits.
    a_bf, z1_bf, z2_bf = jax.block_until_ready(
        fwd_perf(X1, X2, adj, params, noise1, noise2))
    assert a_bf.dtype == jnp.bfloat16
    assert a_bf.shape == (N1, N2)
    assert z1_bf.shape == (N1, LATENT) and z2_bf.shape == (N2, LATENT)
    a_bf32 = np.asarray(a_bf).astype(np.float32)
    assert np.all(np.isfinite(a_bf32))
    assert np.all((a_bf32 >= 0.0) & (a_bf32 <= 1.0))
    assert bool(jnp.all(jnp.isfinite(z1_bf))) and bool(jnp.all(jnp.isfinite(z2_bf)))
    np.testing.assert_allclose(np.asarray(z1_bf), np.asarray(z1_ref),
                               rtol=5e-2, atol=5e-2)
    np.testing.assert_allclose(np.asarray(z2_bf), np.asarray(z2_ref),
                               rtol=5e-2, atol=5e-2)
    np.testing.assert_allclose(a_bf32, np.asarray(a_ref),
                               rtol=1e-1, atol=1e-1)

    print("KERNEL_OK")
</pallas_src>

<mosaic_0001>
module attributes {stable_mosaic.version = 11 : i64} {
  func.func @_propagate_kernel(%arg0: i32, %arg1: memref<96x256xf32, #tpu.memory_space<vmem>>, %arg2: memref<256x64xf32, #tpu.memory_space<vmem>>, %arg3: memref<96x64xf32, #tpu.memory_space<vmem>>) attributes {dimension_semantics = [#tpu.dimension_semantics<parallel>], iteration_bounds = array<i64: 2>, scalar_prefetch = 0 : i64, scratch_operands = 0 : i64, tpu.core_type = #tpu.core_type<tc>, window_params = [{transform_indices = @transform_0, window_bounds = array<i64: 96, 256>}, {pipeline_mode = #tpu.pipeline_mode<synchronous>, transform_indices = @transform_1, window_bounds = array<i64: 256, 64>}, {transform_indices = @transform_2, window_bounds = array<i64: 96, 64>}]} {
    %c0 = arith.constant 0 : index
    %c0_0 = arith.constant 0 : index
    %0 = vector.load %arg1[%c0, %c0_0] : memref<96x256xf32, #tpu.memory_space<vmem>>, vector<96x256xf32>
    %c0_1 = arith.constant 0 : index
    %c0_2 = arith.constant 0 : index
    %1 = vector.load %arg2[%c0_1, %c0_2] : memref<256x64xf32, #tpu.memory_space<vmem>>, vector<256x64xf32>
    %cst = arith.constant dense<0.000000e+00> : vector<96x64xf32>
    %2 = tpu.matmul %0, %1, %cst {dimension_numbers = #tpu.dot_dimension_numbers<[1], [0], [0], [1], [0, 0, 1, 1], [], []>} : vector<96x256xf32>, vector<256x64xf32>, vector<96x64xf32> -> vector<96x64xf32>
    %cst_3 = arith.constant 0.000000e+00 : f32
    %3 = vector.broadcast %cst_3 : f32 to vector<96x64xf32>
    %4 = arith.maximumf %2, %3 : vector<96x64xf32>
    %c0_4 = arith.constant 0 : index
    %c0_5 = arith.constant 0 : index
    %5 = vector.load %arg3[%c0_4, %c0_5] : memref<96x64xf32, #tpu.memory_space<vmem>>, vector<96x64xf32>
    tpu.vector_store %arg3[%c0_4, %c0_5], %4 {strides = array<i32>} : memref<96x64xf32, #tpu.memory_space<vmem>>, vector<96x64xf32>,
    return
  }
  func.func @transform_0(%arg0: i32) -> (i32, i32) {
    %c0_i32 = arith.constant 0 : i32
    %c0_i32_0 = arith.constant 0 : i32
    return %arg0, %c0_i32 : i32, i32
  }
  func.func @transform_1(%arg0: i32) -> (i32, i32) {
    %c0_i32 = arith.constant 0 : i32
    %c0_i32_0 = arith.constant 0 : i32
    %c0_i32_1 = arith.constant 0 : i32
    return %c0_i32, %c0_i32_0 : i32, i32
  }
  func.func @transform_2(%arg0: i32) -> (i32, i32) {
    %c0_i32 = arith.constant 0 : i32
    %c0_i32_0 = arith.constant 0 : i32
    return %arg0, %c0_i32 : i32, i32
  }
}

module attributes {stable_mosaic.version = 11 : i64} {
  func.func @_reparam_kernel(%arg0: i32, %arg1: memref<96x256xf32, #tpu.memory_space<vmem>>, %arg2: memref<256x64xf32, #tpu.memory_space<vmem>>, %arg3: memref<96x32xf32, #tpu.memory_space<vmem>>, %arg4: memref<96x32xf32, #tpu.memory_space<vmem>>, %arg5: memref<96x32xf32, #tpu.memory_space<vmem>>) attributes {dimension_semantics = [#tpu.dimension_semantics<parallel>], iteration_bounds = array<i64: 2>, scalar_prefetch = 0 : i64, scratch_operands = 0 : i64, tpu.core_type = #tpu.core_type<tc>, window_params = [{transform_indices = @transform_0, window_bounds = array<i64: 96, 256>}, {pipeline_mode = #tpu.pipeline_mode<synchronous>, transform_indices = @transform_1, window_bounds = array<i64: 256, 64>}, {transform_indices = @transform_2, window_bounds = array<i64: 96, 32>}, {transform_indices = @transform_3, window_bounds = array<i64: 96, 32>}, {transform_indices = @transform_4, window_bounds = array<i64: 96, 32>}]} {
    %c0 = arith.constant 0 : index
    %c0_0 = arith.constant 0 : index
    %0 = vector.load %arg1[%c0, %c0_0] : memref<96x256xf32, #tpu.memory_space<vmem>>, vector<96x256xf32>
    %c0_1 = arith.constant 0 : index
    %c0_2 = arith.constant 0 : index
    %1 = vector.load %arg2[%c0_1, %c0_2] : memref<256x64xf32, #tpu.memory_space<vmem>>, vector<256x64xf32>
    %cst = arith.constant dense<0.000000e+00> : vector<96x64xf32>
    %2 = tpu.matmul %0, %1, %cst {dimension_numbers = #tpu.dot_dimension_numbers<[1], [0], [0], [1], [0, 0, 1, 1], [], []>} : vector<96x256xf32>, vector<256x64xf32>, vector<96x64xf32> -> vector<96x64xf32>
    %3 = vector.extract_strided_slice %2 {offsets = [0, 0], sizes = [96, 32], strides = [1, 1]} : vector<96x64xf32> to vector<96x32xf32>
    %4 = vector.extract_strided_slice %2 {offsets = [0, 32], sizes = [96, 32], strides = [1, 1]} : vector<96x64xf32> to vector<96x32xf32>
    %c0_3 = arith.constant 0 : index
    %c0_4 = arith.constant 0 : index
    %5 = vector.load %arg3[%c0_3, %c0_4] : memref<96x32xf32, #tpu.memory_space<vmem>>, vector<96x32xf32>
    %6 = math.exp %4 : vector<96x32xf32>
    %7 = arith.mulf %5, %6 : vector<96x32xf32>
    %8 = arith.addf %7, %3 : vector<96x32xf32>
    %c0_5 = arith.constant 0 : index
    %c0_6 = arith.constant 0 : index
    %9 = vector.load %arg4[%c0_5, %c0_6] : memref<96x32xf32, #tpu.memory_space<vmem>>, vector<96x32xf32>
    tpu.vector_store %arg4[%c0_5, %c0_6], %8 {strides = array<i32>} : memref<96x32xf32, #tpu.memory_space<vmem>>, vector<96x32xf32>,
    %c0_7 = arith.constant 0 : index
    %c0_8 = arith.constant 0 : index
    %10 = vector.load %arg5[%c0_7, %c0_8] : memref<96x32xf32, #tpu.memory_space<vmem>>, vector<96x32xf32>
    tpu.vector_store %arg5[%c0_7, %c0_8], %8 {strides = array<i32>} : memref<96x32xf32, #tpu.memory_space<vmem>>, vector<96x32xf32>,
    return
  }
  func.func @transform_0(%arg0: i32) -> (i32, i32) {
    %c0_i32 = arith.constant 0 : i32
    %c0_i32_0 = arith.constant 0 : i32
    return %arg0, %c0_i32 : i32, i32
  }
  func.func @transform_1(%arg0: i32) -> (i32, i32) {
    %c0_i32 = arith.constant 0 : i32
    %c0_i32_0 = arith.constant 0 : i32
    %c0_i32_1 = arith.constant 0 : i32
    return %c0_i32, %c0_i32_0 : i32, i32
  }
  func.func @transform_2(%arg0: i32) -> (i32, i32) {
    %c0_i32 = arith.constant 0 : i32
    %c0_i32_0 = arith.constant 0 : i32
    return %arg0, %c0_i32 : i32, i32
  }
  func.func @transform_3(%arg0: i32) -> (i32, i32) {
    %c0_i32 = arith.constant 0 : i32
    %c0_i32_0 = arith.constant 0 : i32
    return %arg0, %c0_i32 : i32, i32
  }
  func.func @transform_4(%arg0: i32) -> (i32, i32) {
    %c0_i32 = arith.constant 0 : i32
    %c0_i32_0 = arith.constant 0 : i32
    return %arg0, %c0_i32 : i32, i32
  }
}

module attributes {stable_mosaic.version = 11 : i64} {
  func.func @_fused_hidden_reparam_kernel(%arg0: i32, %arg1: memref<128x192xf32, #tpu.memory_space<vmem>>, %arg2: memref<192x128xf32, #tpu.memory_space<vmem>>, %arg3: memref<128x32xf32, #tpu.memory_space<vmem>>, %arg4: memref<128x64xf32, #tpu.memory_space<vmem>>, %arg5: memref<128x32xf32, #tpu.memory_space<vmem>>, %arg6: memref<128x32xf32, #tpu.memory_space<vmem>>) attributes {dimension_semantics = [#tpu.dimension_semantics<parallel>], iteration_bounds = array<i64: 2>, scalar_prefetch = 0 : i64, scratch_operands = 0 : i64, tpu.core_type = #tpu.core_type<tc>, window_params = [{transform_indices = @transform_0, window_bounds = array<i64: 128, 192>}, {pipeline_mode = #tpu.pipeline_mode<synchronous>, transform_indices = @transform_1, window_bounds = array<i64: 192, 128>}, {transform_indices = @transform_2, window_bounds = array<i64: 128, 32>}, {transform_indices = @transform_3, window_bounds = array<i64: 128, 64>}, {transform_indices = @transform_4, window_bounds = array<i64: 128, 32>}, {transform_indices = @transform_5, window_bounds = array<i64: 128, 32>}]} {
    %c0 = arith.constant 0 : index
    %c0_0 = arith.constant 0 : index
    %0 = vector.load %arg1[%c0, %c0_0] : memref<128x192xf32, #tpu.memory_space<vmem>>, vector<128x192xf32>
    %c0_1 = arith.constant 0 : index
    %c0_2 = arith.constant 0 : index
    %1 = vector.load %arg2[%c0_1, %c0_2] : memref<192x128xf32, #tpu.memory_space<vmem>>, vector<192x128xf32>
    %cst = arith.constant dense<0.000000e+00> : vector<128x128xf32>
    %2 = tpu.matmul %0, %1, %cst {dimension_numbers = #tpu.dot_dimension_numbers<[1], [0], [0], [1], [0, 0, 1, 1], [], []>} : vector<128x192xf32>, vector<192x128xf32>, vector<128x128xf32> -> vector<128x128xf32>
    %3 = vector.extract_strided_slice %2 {offsets = [0, 0], sizes = [128, 64], strides = [1, 1]} : vector<128x128xf32> to vector<128x64xf32>
    %cst_3 = arith.constant 0.000000e+00 : f32
    %4 = vector.broadcast %cst_3 : f32 to vector<128x64xf32>
    %5 = arith.maximumf %3, %4 : vector<128x64xf32>
    %c0_4 = arith.constant 0 : index
    %c0_5 = arith.constant 0 : index
    %6 = vector.load %arg4[%c0_4, %c0_5] : memref<128x64xf32, #tpu.memory_space<vmem>>, vector<128x64xf32>
    tpu.vector_store %arg4[%c0_4, %c0_5], %5 {strides = array<i32>} : memref<128x64xf32, #tpu.memory_space<vmem>>, vector<128x64xf32>,
    %7 = vector.extract_strided_slice %2 {offsets = [0, 64], sizes = [128, 32], strides = [1, 1]} : vector<128x128xf32> to vector<128x32xf32>
    %8 = vector.extract_strided_slice %2 {offsets = [0, 96], sizes = [128, 32], strides = [1, 1]} : vector<128x128xf32> to vector<128x32xf32>
    %c0_6 = arith.constant 0 : index
    %c0_7 = arith.constant 0 : index
    %9 = vector.load %arg3[%c0_6, %c0_7] : memref<128x32xf32, #tpu.memory_space<vmem>>, vector<128x32xf32>
    %10 = math.exp %8 : vector<128x32xf32>
    %11 = arith.mulf %9, %10 : vector<128x32xf32>
    %12 = arith.addf %11, %7 : vector<128x32xf32>
    %c0_8 = arith.constant 0 : index
    %c0_9 = arith.constant 0 : index
    %13 = vector.load %arg5[%c0_8, %c0_9] : memref<128x32xf32, #tpu.memory_space<vmem>>, vector<128x32xf32>
    tpu.vector_store %arg5[%c0_8, %c0_9], %12 {strides = array<i32>} : memref<128x32xf32, #tpu.memory_space<vmem>>, vector<128x32xf32>,
    %14 = tpu.iota {dimensions = array<i32: 1>} : vector<1x32xi32>
    %c31_i32 = arith.constant 31 : i32
    %15 = vector.broadcast %c31_i32 : i32 to vector<1x32xi32>
    %16 = arith.cmpi sge, %14, %15 : vector<1x32xi32>
    %cst_10 = arith.constant 0.000000e+00 : f32
    %17 = vector.broadcast %cst_10 : f32 to vector<128x32xf32>
    %18 = arith.subf %17, %12 : vector<128x32xf32>
    %19 = vector.shape_cast %16 : vector<1x32xi1> to vector<1x32xi1>
    %20 = vector.broadcast %19 : vector<1x32xi1> to vector<128x32xi1>
    %21 = arith.select %20, %18, %12 : vector<128x32xi1>, vector<128x32xf32>
    %c0_11 = arith.constant 0 : index
    %c0_12 = arith.constant 0 : index
    %22 = vector.load %arg6[%c0_11, %c0_12] : memref<128x32xf32, #tpu.memory_space<vmem>>, vector<128x32xf32>
    tpu.vector_store %arg6[%c0_11, %c0_12], %21 {strides = array<i32>} : memref<128x32xf32, #tpu.memory_space<vmem>>, vector<128x32xf32>,
    return
  }
  func.func @transform_0(%arg0: i32) -> (i32, i32) {
    %c0_i32 = arith.constant 0 : i32
    %c0_i32_0 = arith.constant 0 : i32
    return %arg0, %c0_i32 : i32, i32
  }
  func.func @transform_1(%arg0: i32) -> (i32, i32) {
    %c0_i32 = arith.constant 0 : i32
    %c0_i32_0 = arith.constant 0 : i32
    %c0_i32_1 = arith.constant 0 : i32
    return %c0_i32, %c0_i32_0 : i32, i32
  }
  func.func @transform_2(%arg0: i32) -> (i32, i32) {
    %c0_i32 = arith.constant 0 : i32
    %c0_i32_0 = arith.constant 0 : i32
    return %arg0, %c0_i32 : i32, i32
  }
  func.func @transform_3(%arg0: i32) -> (i32, i32) {
    %c0_i32 = arith.constant 0 : i32
    %c0_i32_0 = arith.constant 0 : i32
    return %arg0, %c0_i32 : i32, i32
  }
  func.func @transform_4(%arg0: i32) -> (i32, i32) {
    %c0_i32 = arith.constant 0 : i32
    %c0_i32_0 = arith.constant 0 : i32
    return %arg0, %c0_i32 : i32, i32
  }
  func.func @transform_5(%arg0: i32) -> (i32, i32) {
    %c0_i32 = arith.constant 0 : i32
    %c0_i32_0 = arith.constant 0 : i32
    return %arg0, %c0_i32 : i32, i32
  }
}

module attributes {stable_mosaic.version = 11 : i64} {
  func.func @_decode_kernel(%arg0: i32, %arg1: i32, %arg2: memref<128x32xf32, #tpu.memory_space<vmem>>, %arg3: memref<128x32xf32, #tpu.memory_space<vmem>>, %arg4: memref<128x128xf32, #tpu.memory_space<vmem>>) attributes {dimension_semantics = [#tpu.dimension_semantics<parallel>, #tpu.dimension_semantics<parallel>], iteration_bounds = array<i64: 2, 2>, scalar_prefetch = 0 : i64, scratch_operands = 0 : i64, tpu.core_type = #tpu.core_type<tc>, window_params = [{transform_indices = @transform_0, window_bounds = array<i64: 128, 32>}, {transform_indices = @transform_1, window_bounds = array<i64: 128, 32>}, {transform_indices = @transform_2, window_bounds = array<i64: 128, 128>}]} {
    %c0 = arith.constant 0 : index
    %c0_0 = arith.constant 0 : index
    %0 = vector.load %arg2[%c0, %c0_0] : memref<128x32xf32, #tpu.memory_space<vmem>>, vector<128x32xf32>
    %c0_1 = arith.constant 0 : index
    %c0_2 = arith.constant 0 : index
    %1 = vector.load %arg3[%c0_1, %c0_2] : memref<128x32xf32, #tpu.memory_space<vmem>>, vector<128x32xf32>
    %cst = arith.constant dense<0.000000e+00> : vector<128x128xf32>
    %2 = tpu.matmul %0, %1, %cst {dimension_numbers = #tpu.dot_dimension_numbers<[1], [1], [0], [0], [0, 0, 1, 0], [], []>} : vector<128x32xf32>, vector<128x32xf32>, vector<128x128xf32> -> vector<128x128xf32>
    %3 = arith.negf %2 : vector<128x128xf32>
    %4 = math.exp %3 : vector<128x128xf32>
    %cst_3 = arith.constant 1.000000e+00 : f32
    %5 = vector.broadcast %cst_3 : f32 to vector<128x128xf32>
    %6 = arith.addf %5, %4 : vector<128x128xf32>
    %7 = arith.divf %5, %6 : vector<128x128xf32>
    %c0_4 = arith.constant 0 : index
    %c0_5 = arith.constant 0 : index
    %8 = vector.load %arg4[%c0_4, %c0_5] : memref<128x128xf32, #tpu.memory_space<vmem>>, vector<128x128xf32>
    tpu.vector_store %arg4[%c0_4, %c0_5], %7 {strides = array<i32>} : memref<128x128xf32, #tpu.memory_space<vmem>>, vector<128x128xf32>,
    return
  }
  func.func @transform_0(%arg0: i32, %arg1: i32) -> (i32, i32) {
    %c0_i32 = arith.constant 0 : i32
    %c0_i32_0 = arith.constant 0 : i32
    return %arg0, %c0_i32 : i32, i32
  }
  func.func @transform_1(%arg0: i32, %arg1: i32) -> (i32, i32) {
    %c0_i32 = arith.constant 0 : i32
    %c0_i32_0 = arith.constant 0 : i32
    return %arg1, %c0_i32 : i32, i32
  }
  func.func @transform_2(%arg0: i32, %arg1: i32) -> (i32, i32) {
    %c0_i32 = arith.constant 0 : i32
    return %arg0, %arg1 : i32, i32
  }
}

</mosaic_0001>

<llo_original>
// kernel: vbgae_adj_forward.4
$region0: #{vbgae_adj_forward.4}
  #allocation0 [shape = 'u32[]', space=smem, size = 0x4, offset = 0x4, fixed_abs, tag = 'smem constant byte address 0x4 - core index']
  #allocation1 [shape = 'u32[72,128]{1,0:T(1,128)}', space=vmem, size = 0x9000, scoped, tag = 'internal scratch']
  %s0 = inlined_call_operand.vmem [shape: f32[192,256], index: 0, kind: input, shape index: {}]
  %s1 = inlined_call_operand.vmem [shape: f32[256,64], index: 1, kind: input, shape index: {}]
  %s2 = inlined_call_operand.vmem [shape: f32[192,64], index: 2, kind: output, shape index: {}]
  %s3 = sld [smem:[#allocation0]]
  $region41: #{vbgae_adj_forward.4} parent=0
    _
  %s5 = ssub.s32 1, %s3
  %s6 = scalar_select 0, %s5, %s3
  loop: start=0, step=1, limit=4
  $region2: #{vbgae_adj_forward.4} parent=0 // loop_pre_header
    _
  $region3: #{vbgae_adj_forward.4} parent=0 // loop_header
    %s8 = sphi 0, %s12
    %p9 = scmp.ge.s32.totalorder %s8, 4
    %s18 = sphi 0, %s20
    %s21 = sphi 0, %s18
    %s22 = sphi 0, %s21
    %s38 = sphi 0, %s22
    %s42 = sphi 0, %s42
    %s44 = sphi 0, %s42
    %s45 = sphi 0, %s44
    %s59 = sphi 0, %s45
    %s65 = sphi 0, %s67
    %s68 = sphi 0, %s65
    %s69 = sphi 0, %s68
    %s85 = sphi 0, %s69
  $region4: #{vbgae_adj_forward.4} parent=0 // loop_header_branch
    %11 = sbr.rel (%p9) target = $region8
  $region5: #{vbgae_adj_forward.4} parent=0 // loop_body
    %s13 = ssub.s32 %s8, 1
    %s14 = ssub.s32 %s8, 2
    %s15 = sadd.s32 %s8, 1
    %s16 = ssub.s32 %s8, %s15
    %p17 = scmp.eq.s32.totalorder %s16, 0
    %s19 = sadd.s32 %s18, 1
    %s20 = scalar_select %p17, %s18, %s19
    %p23 = pneg %p17
    %p24 = scmp.eq.s32.totalorder %s8, 1
    %p25 = por %p23, %p24
    %p26 = scmp.ne.s32.totalorder %s18, %s21
    %p27 = scmp.eq.s32.totalorder %s8, 0
    %p28 = por %p26, %p27
    %p29 = scmp.ne.s32.totalorder %s18, %s21
    %p30 = scmp.eq.s32.totalorder %s13, 1
    %p31 = por %p29, %p30
    %p32 = scmp.ne.s32.totalorder %s21, %s22
    %p33 = scmp.eq.s32.totalorder %s13, 0
    %p34 = por %p32, %p33
    %p35 = scmp.ne.s32.totalorder %s21, %s22
    %p36 = scmp.eq.s32.totalorder %s14, 1
    %p37 = por %p35, %p36
    %p39 = scmp.ne.s32.totalorder %s22, %s38
    %p40 = scmp.eq.s32.totalorder %s14, 0
    %p41 = por %p39, %p40
    %s43 = sadd.s32 %s42, 1
    %p46 = scmp.eq.s32.totalorder %s8, 1
    %p47 = scmp.ne.s32.totalorder %s42, %s44
    %p48 = scmp.eq.s32.totalorder %s8, 0
    %p49 = por %p47, %p48
    %p50 = scmp.ne.s32.totalorder %s42, %s44
    %p51 = scmp.eq.s32.totalorder %s13, 1
    %p52 = por %p50, %p51
    %p53 = scmp.ne.s32.totalorder %s44, %s45
    %p54 = scmp.eq.s32.totalorder %s13, 0
    %p55 = por %p53, %p54
    %p56 = scmp.ne.s32.totalorder %s44, %s45
    %p57 = scmp.eq.s32.totalorder %s14, 1
    %p58 = por %p56, %p57
    %p60 = scmp.ne.s32.totalorder %s45, %s59
    %p61 = scmp.eq.s32.totalorder %s14, 0
    %p62 = por %p60, %p61
    %s63 = ssub.s32 %s8, %s15
    %p64 = scmp.eq.s32.totalorder %s63, 0
    %s66 = sadd.s32 %s65, 1
    %s67 = scalar_select %p64, %s65, %s66
    %p70 = pneg %p64
    %p71 = scmp.eq.s32.totalorder %s8, 1
    %p72 = por %p70, %p71
    %p73 = scmp.ne.s32.totalorder %s65, %s68
    %p74 = scmp.eq.s32.totalorder %s8, 0
    %p75 = por %p73, %p74
    %p76 = scmp.ne.s32.totalorder %s65, %s68
    %p77 = scmp.eq.s32.totalorder %s13, 1
    %p78 = por %p76, %p77
    %p79 = scmp.ne.s32.totalorder %s68, %s69
    %p80 = scmp.eq.s32.totalorder %s13, 0
    %p81 = por %p79, %p80
    %p82 = scmp.ne.s32.totalorder %s68, %s69
    %p83 = scmp.eq.s32.totalorder %s14, 1
    %p84 = por %p82, %p83
    %p86 = scmp.ne.s32.totalorder %s69, %s85
    %p87 = scmp.eq.s32.totalorder %s14, 0
    %p88 = por %p86, %p87
    %p89 = scmp.le.s32.totalorder 1, %s8
    %p90 = scmp.lt.s32.totalorder %s8, 3
    %p91 = pnand %p89, %p90
    %p92 = pneg %p91
    // Predicated region
    $region9: #{vbgae_adj_forward.4} parent=5 // pred_check
      _
    $region10: #{vbgae_adj_forward.4} parent=5 // pred_check_branch
      %94 = sbr.rel (%p91) target = $region12
    $region11: #{vbgae_adj_forward.4} parent=5 // pred_region
      %s95 = ssub.s32 %s8, 1
      // Predicated region
      $region13: #{vbgae_adj_forward.4} parent=11 // pred_check
        %p96 = pneg %p55
      $region14: #{vbgae_adj_forward.4} parent=11 // pred_check_branch
        %98 = sbr.rel (%p96) target = $region16
      $region15: #{vbgae_adj_forward.4} parent=11 // pred_region
        _
      $region16: #{vbgae_adj_forward.4} parent=11 // pred_fallthru
        _
    $region12: #{vbgae_adj_forward.4} parent=5 // pred_fallthru
      _
    %p99 = scmp.lt.s32.totalorder %s8, 2
    // Predicated region
    $region17: #{vbgae_adj_forward.4} parent=5 // pred_check
      %p100 = pneg %p99
    $region18: #{vbgae_adj_forward.4} parent=5 // pred_check_branch
      %102 = sbr.rel (%p100) target = $region20
    $region19: #{vbgae_adj_forward.4} parent=5 // pred_region
      // Predicated region
      $region21: #{vbgae_adj_forward.4} parent=19 // pred_check
        %p103 = pneg %p28
      $region22: #{vbgae_adj_forward.4} parent=19 // pred_check_branch
        %105 = sbr.rel (%p103) target = $region24
      $region23: #{vbgae_adj_forward.4} parent=19 // pred_region
        %s106 = smul.u32 12, %s8
        %p107 = scmp.lt.s32.totalorder %s106, 23
        %s108 = scalar_select %p107, %s106, 23
        %s109 = smul.addr %s108, 2
        %s110 = smul.addr %s109, 8
        %s111 = scalar_lea.vmem %s0, %s110
        %s112 = smul.u32 12, %s8
      $region24: #{vbgae_adj_forward.4} parent=19 // pred_fallthru
        _
    $region20: #{vbgae_adj_forward.4} parent=5 // pred_fallthru
      _
    %p113 = scmp.le.s32.totalorder 1, %s8
    %p114 = scmp.lt.s32.totalorder %s8, 3
    %p115 = pnand %p113, %p114
    %p116 = pneg %p115
    // Predicated region
    $region25: #{vbgae_adj_forward.4} parent=5 // pred_check
      _
    $region26: #{vbgae_adj_forward.4} parent=5 // pred_check_branch
      %118 = sbr.rel (%p115) target = $region28
    $region27: #{vbgae_adj_forward.4} parent=5 // pred_region
      %s119 = ssub.s32 %s8, 1
      %s120 = smul.u32 12, %s13
      %p121 = scmp.lt.s32.totalorder %s120, 23
      %s122 = scalar_select %p121, %s120, 23
      %s123 = smul.addr %s122, 2
      %s124 = smul.addr %s123, 8
      %s125 = scalar_lea.vmem %s0, %s124
      %p126 = pneg %p34
      %p127 = pneg %p31
      %p128 = pneg %p55
      %p129 = pneg %p52
      %p130 = pneg %p81
      %p131 = pneg %p78
      %s132 = smul.u32 12, %s13
      %p133 = scmp.lt.s32.totalorder %s132, 23
      %s134 = scalar_select %p133, %s132, 23
      %s135 = smul.addr %s134, 8
      %s136 = scalar_lea.vmem %s2, %s135
      %s137 = smul.u32 12, %s13
      %p138 = scmp.lt.s32.totalorder %s137, 23
      %s139 = scalar_select %p138, %s137, 23
      %s140 = smul.addr %s139, 2
      %s141 = smul.addr %s140, 8
      %s142 = scalar_lea.vmem %s0, %s141
      %s143 = smul.u32 12, %s13
      %s144 = smul.u32 12, %s13
      %p145 = scmp.lt.s32.totalorder %s144, 23
      %s146 = scalar_select %p145, %s144, 23
      %s147 = smul.addr %s146, 8
      %s148 = scalar_lea.vmem %s2, %s147
      %s149 = smul.u32 12, %s13
      %v150 = vld [vmem:[%s142] sm:$0xff]
      %v151 = vld [vmem:[%s142 + $0x8] sm:$0xff]
      %v152 = vld [vmem:[%s142 + $0x10] sm:$0xff]
      %v153 = vld [vmem:[%s142 + $0x18] sm:$0xff]
      %v154 = vld [vmem:[%s142 + $0x20] sm:$0xff]
      %v155 = vld [vmem:[%s142 + $0x28] sm:$0xff]
      %v156 = vld [vmem:[%s142 + $0x30] sm:$0xff]
      %v157 = vld [vmem:[%s142 + $0x38] sm:$0xff]
      %v158 = vld [vmem:[%s142 + $0x40] sm:$0xff]
      %v159 = vld [vmem:[%s142 + $0x48] sm:$0xff]
      %v160 = vld [vmem:[%s142 + $0x50] sm:$0xff]
      %v161 = vld [vmem:[%s142 + $0x58] sm:$0xff]
      %v162 = vld [vmem:[%s142 + $0x60] sm:$0xff]
      %v163 = vld [vmem:[%s142 + $0x68] sm:$0xff]
      %v164 = vld [vmem:[%s142 + $0x70] sm:$0xff]
      %v165 = vld [vmem:[%s142 + $0x78] sm:$0xff]
      %v166 = vld [vmem:[%s142 + $0x80] sm:$0xff]
      %v167 = vld [vmem:[%s142 + $0x88] sm:$0xff]
      %v168 = vld [vmem:[%s142 + $0x90] sm:$0xff]
      %v169 = vld [vmem:[%s142 + $0x98] sm:$0xff]
      %v170 = vld [vmem:[%s142 + $0xa0] sm:$0xff]
      %v171 = vld [vmem:[%s142 + $0xa8] sm:$0xff]
      %v172 = vld [vmem:[%s142 + $0xb0] sm:$0xff]
      %v173 = vld [vmem:[%s142 + $0xb8] sm:$0xff]
      %v174 = vld [vmem:[%s1] sm:$0xff]
      %v175 = vld [vmem:[%s1 + $0x8] sm:$0xff]
      %v176 = vld [vmem:[%s1 + $0x10] sm:$0xff]
      %v177 = vld [vmem:[%s1 + $0x18] sm:$0xff]
      %v178 = vld [vmem:[%s1 + $0x20] sm:$0xff]
      %v179 = vld [vmem:[%s1 + $0x28] sm:$0xff]
      %v180 = vld [vmem:[%s1 + $0x30] sm:$0xff]
      %v181 = vld [vmem:[%s1 + $0x38] sm:$0xff]
      %v182 = vld [vmem:[%s1 + $0x40] sm:$0xff]
      %v183 = vld [vmem:[%s1 + $0x48] sm:$0xff]
      %v184 = vld [vmem:[%s1 + $0x50] sm:$0xff]
      %v185 = vld [vmem:[%s1 + $0x58] sm:$0xff]
      %v186 = vld [vmem:[%s1 + $0x60] sm:$0xff]
      %v187 = vld [vmem:[%s1 + $0x68] sm:$0xff]
      %v188 = vld [vmem:[%s1 + $0x70] sm:$0xff]
      %v189 = vld [vmem:[%s1 + $0x78] sm:$0xff]
      %v190 = vld [vmem:[%s1 + $0x80] sm:$0xff]
      %v191 = vld [vmem:[%s1 + $0x88] sm:$0xff]
      %v192 = vld [vmem:[%s1 + $0x90] sm:$0xff]
      %v193 = vld [vmem:[%s1 + $0x98] sm:$0xff]
      %v194 = vld [vmem:[%s1 + $0xa0] sm:$0xff]
      %v195 = vld [vmem:[%s1 + $0xa8] sm:$0xff]
      %v196 = vld [vmem:[%s1 + $0xb0] sm:$0xff]
      %v197 = vld [vmem:[%s1 + $0xb8] sm:$0xff]
      %v198 = vld [vmem:[%s1 + $0xc0] sm:$0xff]
      %v199 = vld [vmem:[%s1 + $0xc8] sm:$0xff]
      %v200 = vld [vmem:[%s1 + $0xd0] sm:$0xff]
      %v201 = vld [vmem:[%s1 + $0xd8] sm:$0xff]
      %v202 = vld [vmem:[%s1 + $0xe0] sm:$0xff]
      %v203 = vld [vmem:[%s1 + $0xe8] sm:$0xff]
      %v204 = vld [vmem:[%s1 + $0xf0] sm:$0xff]
      %v205 = vld [vmem:[%s1 + $0xf8] sm:$0xff]
      %206 = vmatpush.msra.mxu0 %v189
      %207 = vmatpush.msra.mxu0 %v188
      %208 = vmatpush.msra.mxu0 %v187
      %209 = vmatpush.msra.mxu0 %v186
      %210 = vmatpush.msra.mxu0 %v185
      %211 = vmatpush.msra.mxu0 %v184
      %212 = vmatpush.msra.mxu0 %v183
      %213 = vmatpush.msra.mxu0 %v182
      %214 = vmatpush.msra.mxu0 %v181
      %215 = vmatpush.msra.mxu0 %v180
      %216 = vmatpush.msra.mxu0 %v179
      %217 = vmatpush.msra.mxu0 %v178
      %218 = vmatpush.msra.mxu0 %v177
      %219 = vmatpush.msra.mxu0 %v176
      %220 = vmatpush.msra.mxu0 %v175
      %221 = vmatpush.msra.mxu0 %v174
      %222 = vmatmul.f32.gmra.mxu0 %v150
      %v223 = vpop.f32.mrf.mxu0
      %v224 = vadd.f32 0.0, %v223
      %225 = vmatmul.f32.gmra.mxu0 %v152
      %v226 = vpop.f32.mrf.mxu0
      %v227 = vadd.f32 0.0, %v226
      %228 = vmatmul.f32.gmra.mxu0 %v154
      %v229 = vpop.f32.mrf.mxu0
      %v230 = vadd.f32 0.0, %v229
      %231 = vmatmul.f32.gmra.mxu0 %v156
      %v232 = vpop.f32.mrf.mxu0
      %v233 = vadd.f32 0.0, %v232
      %234 = vmatmul.f32.gmra.mxu0 %v158
      %v235 = vpop.f32.mrf.mxu0
      %v236 = vadd.f32 0.0, %v235
      %237 = vmatmul.f32.gmra.mxu0 %v160
      %v238 = vpop.f32.mrf.mxu0
      %v239 = vadd.f32 0.0, %v238
      %240 = vmatmul.f32.gmra.mxu0 %v162
      %v241 = vpop.f32.mrf.mxu0
      %v242 = vadd.f32 0.0, %v241
      %243 = vmatmul.f32.gmra.mxu0 %v164
      %v244 = vpop.f32.mrf.mxu0
      %v245 = vadd.f32 0.0, %v244
      %246 = vmatmul.f32.gmra.mxu0 %v166
      %v247 = vpop.f32.mrf.mxu0
      %v248 = vadd.f32 0.0, %v247
      %249 = vmatmul.f32.gmra.mxu0 %v168
      %v250 = vpop.f32.mrf.mxu0
      %v251 = vadd.f32 0.0, %v250
      %252 = vmatmul.f32.gmra.mxu0 %v170
      %v253 = vpop.f32.mrf.mxu0
      %v254 = vadd.f32 0.0, %v253
      %255 = vmatmul.f32.gmra.mxu0 %v172
      %v256 = vpop.f32.mrf.mxu0
      %v257 = vadd.f32 0.0, %v256
      %258 = vdwg.mxu0
      %259 = vmatpush.msra.mxu0 %v205
      %260 = vmatpush.msra.mxu0 %v204
      %261 = vmatpush.msra.mxu0 %v203
      %262 = vmatpush.msra.mxu0 %v202
      %263 = vmatpush.msra.mxu0 %v201
      %264 = vmatpush.msra.mxu0 %v200
      %265 = vmatpush.msra.mxu0 %v199
      %266 = vmatpush.msra.mxu0 %v198
      %267 = vmatpush.msra.mxu0 %v197
      %268 = vmatpush.msra.mxu0 %v196
      %269 = vmatpush.msra.mxu0 %v195
      %270 = vmatpush.msra.mxu0 %v194
      %271 = vmatpush.msra.mxu0 %v193
      %272 = vmatpush.msra.mxu0 %v192
      %273 = vmatpush.msra.mxu0 %v191
      %274 = vmatpush.msra.mxu0 %v190
      %275 = vmatmul.f32.gmra.mxu0 %v151
      %v276 = vpop.f32.mrf.mxu0
      %v277 = vadd.f32 %v224, %v276
      %278 = vmatmul.f32.gmra.mxu0 %v153
      %v279 = vpop.f32.mrf.mxu0
      %v280 = vadd.f32 %v227, %v279
      %281 = vmatmul.f32.gmra.mxu0 %v155
      %v282 = vpop.f32.mrf.mxu0
      %v283 = vadd.f32 %v230, %v282
      %284 = vmatmul.f32.gmra.mxu0 %v157
      %v285 = vpop.f32.mrf.mxu0
      %v286 = vadd.f32 %v233, %v285
      %287 = vmatmul.f32.gmra.mxu0 %v159
      %v288 = vpop.f32.mrf.mxu0
      %v289 = vadd.f32 %v236, %v288
      %290 = vmatmul.f32.gmra.mxu0 %v161
      %v291 = vpop.f32.mrf.mxu0
      %v292 = vadd.f32 %v239, %v291
      %293 = vmatmul.f32.gmra.mxu0 %v163
      %v294 = vpop.f32.mrf.mxu0
      %v295 = vadd.f32 %v242, %v294
      %296 = vmatmul.f32.gmra.mxu0 %v165
      %v297 = vpop.f32.mrf.mxu0
      %v298 = vadd.f32 %v245, %v297
      %299 = vmatmul.f32.gmra.mxu0 %v167
      %v300 = vpop.f32.mrf.mxu0
      %v301 = vadd.f32 %v248, %v300
      %302 = vmatmul.f32.gmra.mxu0 %v169
      %v303 = vpop.f32.mrf.mxu0
      %v304 = vadd.f32 %v251, %v303
      %305 = vmatmul.f32.gmra.mxu0 %v171
      %v306 = vpop.f32.mrf.mxu0
      %v307 = vadd.f32 %v254, %v306
      %308 = vmatmul.f32.gmra.mxu0 %v173
      %v309 = vpop.f32.mrf.mxu0
      %v310 = vadd.f32 %v257, %v309
      %311 = vdwg.mxu0
      %v312 = vmax.f32 %v277, 0.0
      %v313 = vmax.f32 %v280, 0.0
      %v314 = vmax.f32 %v283, 0.0
      %v315 = vmax.f32 %v286, 0.0
      %v316 = vmax.f32 %v289, 0.0
      %v317 = vmax.f32 %v292, 0.0
      %v318 = vmax.f32 %v295, 0.0
      %v319 = vmax.f32 %v298, 0.0
      %v320 = vmax.f32 %v301, 0.0
      %v321 = vmax.f32 %v304, 0.0
      %v322 = vmax.f32 %v307, 0.0
      %v323 = vmax.f32 %v310, 0.0
      %vm324 = vcmask 523264
      %325 = vst.msk [vmem:[%s148] sm:$0xff] %vm324, %v312
      %326 = vst.msk [vmem:[%s148 + $0x8] sm:$0xff] %vm324, %v313
      %327 = vst.msk [vmem:[%s148 + $0x10] sm:$0xff] %vm324, %v314
      %328 = vst.msk [vmem:[%s148 + $0x18] sm:$0xff] %vm324, %v315
      %329 = vst.msk [vmem:[%s148 + $0x20] sm:$0xff] %vm324, %v316
      %330 = vst.msk [vmem:[%s148 + $0x28] sm:$0xff] %vm324, %v317
      %331 = vst.msk [vmem:[%s148 + $0x30] sm:$0xff] %vm324, %v318
      %332 = vst.msk [vmem:[%s148 + $0x38] sm:$0xff] %vm324, %v319
      %333 = vst.msk [vmem:[%s148 + $0x40] sm:$0xff] %vm324, %v320
      %334 = vst.msk [vmem:[%s148 + $0x48] sm:$0xff] %vm324, %v321
      %335 = vst.msk [vmem:[%s148 + $0x50] sm:$0xff] %vm324, %v322
      %336 = vst.msk [vmem:[%s148 + $0x58] sm:$0xff] %vm324, %v323
      %s337 = smul.u32 12, %s13
      %p338 = scmp.lt.s32.totalorder %s337, 23
      %s339 = scalar_select %p338, %s337, 23
      %s340 = smul.addr %s339, 8
      %s341 = scalar_lea.vmem %s2, %s340
      // Predicated region
      $region29: #{vbgae_adj_forward.4} parent=27 // pred_check
        %p342 = pneg %p78
      $region30: #{vbgae_adj_forward.4} parent=27 // pred_check_branch
        %344 = sbr.rel (%p342) target = $region32
      $region31: #{vbgae_adj_forward.4} parent=27 // pred_region
        %s345 = smul.u32 12, %s13
      $region32: #{vbgae_adj_forward.4} parent=27 // pred_fallthru
        _
    $region28: #{vbgae_adj_forward.4} parent=5 // pred_fallthru
      _
    %p346 = scmp.le.s32.totalorder 2, %s8
    // Predicated region
    $region33: #{vbgae_adj_forward.4} parent=5 // pred_check
      %p347 = pneg %p346
    $region34: #{vbgae_adj_forward.4} parent=5 // pred_check_branch
      %349 = sbr.rel (%p347) target = $region36
    $region35: #{vbgae_adj_forward.4} parent=5 // pred_region
      %s350 = ssub.s32 %s8, 2
      // Predicated region
      $region37: #{vbgae_adj_forward.4} parent=35 // pred_check
        %p351 = pneg %p84
      $region38: #{vbgae_adj_forward.4} parent=35 // pred_check_branch
        %353 = sbr.rel (%p351) target = $region40
      $region39: #{vbgae_adj_forward.4} parent=35 // pred_region
        %s354 = smul.u32 12, %s14
        %p355 = scmp.lt.s32.totalorder %s354, 23
        %s356 = scalar_select %p355, %s354, 23
        %s357 = smul.addr %s356, 8
        %s358 = scalar_lea.vmem %s2, %s357
      $region40: #{vbgae_adj_forward.4} parent=35 // pred_fallthru
        _
    $region36: #{vbgae_adj_forward.4} parent=5 // pred_fallthru
      _
  $region6: #{vbgae_adj_forward.4} parent=0 // loop_footer
    %s12 = sadd.s32 1, %s8
  $region7: #{vbgae_adj_forward.4} parent=0 // loop_footer_branch
    %7 = sbr.rel target = $region3
  $region8: #{vbgae_adj_forward.4} parent=0 // loop_exit
    _

// kernel: vbgae_adj_forward.6
$region0: #{vbgae_adj_forward.6}
  #allocation0 [shape = 'u32[]', space=smem, size = 0x4, offset = 0x4, fixed_abs, tag = 'smem constant byte address 0x4 - core index']
  #allocation1 [shape = 'u32[72,128]{1,0:T(1,128)}', space=vmem, size = 0x9000, scoped, tag = 'internal scratch']
  %s0 = inlined_call_operand.vmem [shape: f32[192,256], index: 0, kind: input, shape index: {}]
  %s1 = inlined_call_operand.vmem [shape: f32[256,64], index: 1, kind: input, shape index: {}]
  %s2 = inlined_call_operand.vmem [shape: f32[192,32], index: 2, kind: input, shape index: {}]
  %s3 = inlined_call_operand.vmem [shape: f32[192,32], index: 3, kind: output, shape index: {0}]
  %s4 = inlined_call_operand.vmem [shape: f32[192,32], index: 4, kind: output, shape index: {1}]
  %5 = xla_tuple %s3, %s4
  %s6 = sld [smem:[#allocation0]]
  $region53: #{vbgae_adj_forward.6} parent=0
    _
  %s8 = ssub.s32 1, %s6
  %s9 = scalar_select 0, %s8, %s6
  loop: start=0, step=1, limit=4
  $region2: #{vbgae_adj_forward.6} parent=0 // loop_pre_header
    _
  $region3: #{vbgae_adj_forward.6} parent=0 // loop_header
    %s11 = sphi 0, %s15
    %p12 = scmp.ge.s32.totalorder %s11, 4
    %s21 = sphi 0, %s23
    %s24 = sphi 0, %s21
    %s25 = sphi 0, %s24
    %s41 = sphi 0, %s25
    %s45 = sphi 0, %s45
    %s47 = sphi 0, %s45
    %s48 = sphi 0, %s47
    %s62 = sphi 0, %s48
    %s68 = sphi 0, %s70
    %s71 = sphi 0, %s68
    %s72 = sphi 0, %s71
    %s88 = sphi 0, %s72
    %s94 = sphi 0, %s96
    %s97 = sphi 0, %s94
    %s98 = sphi 0, %s97
    %s114 = sphi 0, %s98
    %s120 = sphi 0, %s122
    %s123 = sphi 0, %s120
    %s124 = sphi 0, %s123
    %s140 = sphi 0, %s124
  $region4: #{vbgae_adj_forward.6} parent=0 // loop_header_branch
    %14 = sbr.rel (%p12) target = $region8
  $region5: #{vbgae_adj_forward.6} parent=0 // loop_body
    %s16 = ssub.s32 %s11, 1
    %s17 = ssub.s32 %s11, 2
    %s18 = sadd.s32 %s11, 1
    %s19 = ssub.s32 %s11, %s18
    %p20 = scmp.eq.s32.totalorder %s19, 0
    %s22 = sadd.s32 %s21, 1
    %s23 = scalar_select %p20, %s21, %s22
    %p26 = pneg %p20
    %p27 = scmp.eq.s32.totalorder %s11, 1
    %p28 = por %p26, %p27
    %p29 = scmp.ne.s32.totalorder %s21, %s24
    %p30 = scmp.eq.s32.totalorder %s11, 0
    %p31 = por %p29, %p30
    %p32 = scmp.ne.s32.totalorder %s21, %s24
    %p33 = scmp.eq.s32.totalorder %s16, 1
    %p34 = por %p32, %p33
    %p35 = scmp.ne.s32.totalorder %s24, %s25
    %p36 = scmp.eq.s32.totalorder %s16, 0
    %p37 = por %p35, %p36
    %p38 = scmp.ne.s32.totalorder %s24, %s25
    %p39 = scmp.eq.s32.totalorder %s17, 1
    %p40 = por %p38, %p39
    %p42 = scmp.ne.s32.totalorder %s25, %s41
    %p43 = scmp.eq.s32.totalorder %s17, 0
    %p44 = por %p42, %p43
    %s46 = sadd.s32 %s45, 1
    %p49 = scmp.eq.s32.totalorder %s11, 1
    %p50 = scmp.ne.s32.totalorder %s45, %s47
    %p51 = scmp.eq.s32.totalorder %s11, 0
    %p52 = por %p50, %p51
    %p53 = scmp.ne.s32.totalorder %s45, %s47
    %p54 = scmp.eq.s32.totalorder %s16, 1
    %p55 = por %p53, %p54
    %p56 = scmp.ne.s32.totalorder %s47, %s48
    %p57 = scmp.eq.s32.totalorder %s16, 0
    %p58 = por %p56, %p57
    %p59 = scmp.ne.s32.totalorder %s47, %s48
    %p60 = scmp.eq.s32.totalorder %s17, 1
    %p61 = por %p59, %p60
    %p63 = scmp.ne.s32.totalorder %s48, %s62
    %p64 = scmp.eq.s32.totalorder %s17, 0
    %p65 = por %p63, %p64
    %s66 = ssub.s32 %s11, %s18
    %p67 = scmp.eq.s32.totalorder %s66, 0
    %s69 = sadd.s32 %s68, 1
    %s70 = scalar_select %p67, %s68, %s69
    %p73 = pneg %p67
    %p74 = scmp.eq.s32.totalorder %s11, 1
    %p75 = por %p73, %p74
    %p76 = scmp.ne.s32.totalorder %s68, %s71
    %p77 = scmp.eq.s32.totalorder %s11, 0
    %p78 = por %p76, %p77
    %p79 = scmp.ne.s32.totalorder %s68, %s71
    %p80 = scmp.eq.s32.totalorder %s16, 1
    %p81 = por %p79, %p80
    %p82 = scmp.ne.s32.totalorder %s71, %s72
    %p83 = scmp.eq.s32.totalorder %s16, 0
    %p84 = por %p82, %p83
    %p85 = scmp.ne.s32.totalorder %s71, %s72
    %p86 = scmp.eq.s32.totalorder %s17, 1
    %p87 = por %p85, %p86
    %p89 = scmp.ne.s32.totalorder %s72, %s88
    %p90 = scmp.eq.s32.totalorder %s17, 0
    %p91 = por %p89, %p90
    %s92 = ssub.s32 %s11, %s18
    %p93 = scmp.eq.s32.totalorder %s92, 0
    %s95 = sadd.s32 %s94, 1
    %s96 = scalar_select %p93, %s94, %s95
    %p99 = pneg %p93
    %p100 = scmp.eq.s32.totalorder %s11, 1
    %p101 = por %p99, %p100
    %p102 = scmp.ne.s32.totalorder %s94, %s97
    %p103 = scmp.eq.s32.totalorder %s11, 0
    %p104 = por %p102, %p103
    %p105 = scmp.ne.s32.totalorder %s94, %s97
    %p106 = scmp.eq.s32.totalorder %s16, 1
    %p107 = por %p105, %p106
    %p108 = scmp.ne.s32.totalorder %s97, %s98
    %p109 = scmp.eq.s32.totalorder %s16, 0
    %p110 = por %p108, %p109
    %p111 = scmp.ne.s32.totalorder %s97, %s98
    %p112 = scmp.eq.s32.totalorder %s17, 1
    %p113 = por %p111, %p112
    %p115 = scmp.ne.s32.totalorder %s98, %s114
    %p116 = scmp.eq.s32.totalorder %s17, 0
    %p117 = por %p115, %p116
    %s118 = ssub.s32 %s11, %s18
    %p119 = scmp.eq.s32.totalorder %s118, 0
    %s121 = sadd.s32 %s120, 1
    %s122 = scalar_select %p119, %s120, %s121
    %p125 = pneg %p119
    %p126 = scmp.eq.s32.totalorder %s11, 1
    %p127 = por %p125, %p126
    %p128 = scmp.ne.s32.totalorder %s120, %s123
    %p129 = scmp.eq.s32.totalorder %s11, 0
    %p130 = por %p128, %p129
    %p131 = scmp.ne.s32.totalorder %s120, %s123
    %p132 = scmp.eq.s32.totalorder %s16, 1
    %p133 = por %p131, %p132
    %p134 = scmp.ne.s32.totalorder %s123, %s124
    %p135 = scmp.eq.s32.totalorder %s16, 0
    %p136 = por %p134, %p135
    %p137 = scmp.ne.s32.totalorder %s123, %s124
    %p138 = scmp.eq.s32.totalorder %s17, 1
    %p139 = por %p137, %p138
    %p141 = scmp.ne.s32.totalorder %s124, %s140
    %p142 = scmp.eq.s32.totalorder %s17, 0
    %p143 = por %p141, %p142
    %p144 = scmp.le.s32.totalorder 1, %s11
    %p145 = scmp.lt.s32.totalorder %s11, 3
    %p146 = pnand %p144, %p145
    %p147 = pneg %p146
    // Predicated region
    $region9: #{vbgae_adj_forward.6} parent=5 // pred_check
      _
    $region10: #{vbgae_adj_forward.6} parent=5 // pred_check_branch
      %149 = sbr.rel (%p146) target = $region12
    $region11: #{vbgae_adj_forward.6} parent=5 // pred_region
      %s150 = ssub.s32 %s11, 1
      // Predicated region
      $region13: #{vbgae_adj_forward.6} parent=11 // pred_check
        %p151 = pneg %p58
      $region14: #{vbgae_adj_forward.6} parent=11 // pred_check_branch
        %153 = sbr.rel (%p151) target = $region16
      $region15: #{vbgae_adj_forward.6} parent=11 // pred_region
        _
      $region16: #{vbgae_adj_forward.6} parent=11 // pred_fallthru
        _
    $region12: #{vbgae_adj_forward.6} parent=5 // pred_fallthru
      _
    %p154 = scmp.lt.s32.totalorder %s11, 2
    // Predicated region
    $region17: #{vbgae_adj_forward.6} parent=5 // pred_check
      %p155 = pneg %p154
    $region18: #{vbgae_adj_forward.6} parent=5 // pred_check_branch
      %157 = sbr.rel (%p155) target = $region20
    $region19: #{vbgae_adj_forward.6} parent=5 // pred_region
      // Predicated region
      $region21: #{vbgae_adj_forward.6} parent=19 // pred_check
        %p158 = pneg %p31
      $region22: #{vbgae_adj_forward.6} parent=19 // pred_check_branch
        %160 = sbr.rel (%p158) target = $region24
      $region23: #{vbgae_adj_forward.6} parent=19 // pred_region
        %s161 = smul.u32 12, %s11
        %p162 = scmp.lt.s32.totalorder %s161, 23
        %s163 = scalar_select %p162, %s161, 23
        %s164 = smul.addr %s163, 2
        %s165 = smul.addr %s164, 8
        %s166 = scalar_lea.vmem %s0, %s165
        %s167 = smul.u32 12, %s11
      $region24: #{vbgae_adj_forward.6} parent=19 // pred_fallthru
        _
      // Predicated region
      $region25: #{vbgae_adj_forward.6} parent=19 // pred_check
        %p168 = pneg %p78
      $region26: #{vbgae_adj_forward.6} parent=19 // pred_check_branch
        %170 = sbr.rel (%p168) target = $region28
      $region27: #{vbgae_adj_forward.6} parent=19 // pred_region
        %s171 = smul.u32 12, %s11
        %p172 = scmp.lt.s32.totalorder %s171, 23
        %s173 = scalar_select %p172, %s171, 23
        %s174 = smul.addr %s173, 8
        %s175 = scalar_lea.vmem %s2, %s174
        %s176 = smul.u32 12, %s11
      $region28: #{vbgae_adj_forward.6} parent=19 // pred_fallthru
        _
    $region20: #{vbgae_adj_forward.6} parent=5 // pred_fallthru
      _
    %p177 = scmp.le.s32.totalorder 1, %s11
    %p178 = scmp.lt.s32.totalorder %s11, 3
    %p179 = pnand %p177, %p178
    %p180 = pneg %p179
    // Predicated region
    $region29: #{vbgae_adj_forward.6} parent=5 // pred_check
      _
    $region30: #{vbgae_adj_forward.6} parent=5 // pred_check_branch
      %182 = sbr.rel (%p179) target = $region32
    $region31: #{vbgae_adj_forward.6} parent=5 // pred_region
      %s183 = ssub.s32 %s11, 1
      %s184 = smul.u32 12, %s16
      %p185 = scmp.lt.s32.totalorder %s184, 23
      %s186 = scalar_select %p185, %s184, 23
      %s187 = smul.addr %s186, 2
      %s188 = smul.addr %s187, 8
      %s189 = scalar_lea.vmem %s0, %s188
      %p190 = pneg %p37
      %p191 = pneg %p34
      %p192 = pneg %p58
      %p193 = pneg %p55
      %s194 = smul.u32 12, %s16
      %p195 = scmp.lt.s32.totalorder %s194, 23
      %s196 = scalar_select %p195, %s194, 23
      %s197 = smul.addr %s196, 8
      %s198 = scalar_lea.vmem %s2, %s197
      %p199 = pneg %p84
      %p200 = pneg %p81
      %p201 = pneg %p110
      %p202 = pneg %p107
      %s203 = smul.u32 12, %s16
      %p204 = scmp.lt.s32.totalorder %s203, 23
      %s205 = scalar_select %p204, %s203, 23
      %s206 = smul.addr %s205, 8
      %s207 = scalar_lea.vmem %s3, %s206
      %p208 = pneg %p136
      %p209 = pneg %p133
      %s210 = smul.u32 12, %s16
      %p211 = scmp.lt.s32.totalorder %s210, 23
      %s212 = scalar_select %p211, %s210, 23
      %s213 = smul.addr %s212, 8
      %s214 = scalar_lea.vmem %s4, %s213
      %s215 = smul.u32 12, %s16
      %p216 = scmp.lt.s32.totalorder %s215, 23
      %s217 = scalar_select %p216, %s215, 23
      %s218 = smul.addr %s217, 2
      %s219 = smul.addr %s218, 8
      %s220 = scalar_lea.vmem %s0, %s219
      %s221 = smul.u32 12, %s16
      %s222 = smul.u32 12, %s16
      %p223 = scmp.lt.s32.totalorder %s222, 23
      %s224 = scalar_select %p223, %s222, 23
      %s225 = smul.addr %s224, 8
      %s226 = scalar_lea.vmem %s2, %s225
      %s227 = smul.u32 12, %s16
      %s228 = smul.u32 12, %s16
      %p229 = scmp.lt.s32.totalorder %s228, 23
      %s230 = scalar_select %p229, %s228, 23
      %s231 = smul.addr %s230, 8
      %s232 = scalar_lea.vmem %s3, %s231
      %s233 = smul.u32 12, %s16
      %s234 = smul.u32 12, %s16
      %p235 = scmp.lt.s32.totalorder %s234, 23
      %s236 = scalar_select %p235, %s234, 23
      %s237 = smul.addr %s236, 8
      %s238 = scalar_lea.vmem %s4, %s237
      %s239 = smul.u32 12, %s16
      %v240 = vld [vmem:[%s220] sm:$0xff]
      %v241 = vld [vmem:[%s220 + $0x8] sm:$0xff]
      %v242 = vld [vmem:[%s220 + $0x10] sm:$0xff]
      %v243 = vld [vmem:[%s220 + $0x18] sm:$0xff]
      %v244 = vld [vmem:[%s220 + $0x20] sm:$0xff]
      %v245 = vld [vmem:[%s220 + $0x28] sm:$0xff]
      %v246 = vld [vmem:[%s220 + $0x30] sm:$0xff]
      %v247 = vld [vmem:[%s220 + $0x38] sm:$0xff]
      %v248 = vld [vmem:[%s220 + $0x40] sm:$0xff]
      %v249 = vld [vmem:[%s220 + $0x48] sm:$0xff]
      %v250 = vld [vmem:[%s220 + $0x50] sm:$0xff]
      %v251 = vld [vmem:[%s220 + $0x58] sm:$0xff]
      %v252 = vld [vmem:[%s220 + $0x60] sm:$0xff]
      %v253 = vld [vmem:[%s220 + $0x68] sm:$0xff]
      %v254 = vld [vmem:[%s220 + $0x70] sm:$0xff]
      %v255 = vld [vmem:[%s220 + $0x78] sm:$0xff]
      %v256 = vld [vmem:[%s220 + $0x80] sm:$0xff]
      %v257 = vld [vmem:[%s220 + $0x88] sm:$0xff]
      %v258 = vld [vmem:[%s220 + $0x90] sm:$0xff]
      %v259 = vld [vmem:[%s220 + $0x98] sm:$0xff]
      %v260 = vld [vmem:[%s220 + $0xa0] sm:$0xff]
      %v261 = vld [vmem:[%s220 + $0xa8] sm:$0xff]
      %v262 = vld [vmem:[%s220 + $0xb0] sm:$0xff]
      %v263 = vld [vmem:[%s220 + $0xb8] sm:$0xff]
      %v264 = vld [vmem:[%s1] sm:$0xff]
      %v265 = vld [vmem:[%s1 + $0x8] sm:$0xff]
      %v266 = vld [vmem:[%s1 + $0x10] sm:$0xff]
      %v267 = vld [vmem:[%s1 + $0x18] sm:$0xff]
      %v268 = vld [vmem:[%s1 + $0x20] sm:$0xff]
      %v269 = vld [vmem:[%s1 + $0x28] sm:$0xff]
      %v270 = vld [vmem:[%s1 + $0x30] sm:$0xff]
      %v271 = vld [vmem:[%s1 + $0x38] sm:$0xff]
      %v272 = vld [vmem:[%s1 + $0x40] sm:$0xff]
      %v273 = vld [vmem:[%s1 + $0x48] sm:$0xff]
      %v274 = vld [vmem:[%s1 + $0x50] sm:$0xff]
      %v275 = vld [vmem:[%s1 + $0x58] sm:$0xff]
      %v276 = vld [vmem:[%s1 + $0x60] sm:$0xff]
      %v277 = vld [vmem:[%s1 + $0x68] sm:$0xff]
      %v278 = vld [vmem:[%s1 + $0x70] sm:$0xff]
      %v279 = vld [vmem:[%s1 + $0x78] sm:$0xff]
      %v280 = vld [vmem:[%s1 + $0x80] sm:$0xff]
      %v281 = vld [vmem:[%s1 + $0x88] sm:$0xff]
      %v282 = vld [vmem:[%s1 + $0x90] sm:$0xff]
      %v283 = vld [vmem:[%s1 + $0x98] sm:$0xff]
      %v284 = vld [vmem:[%s1 + $0xa0] sm:$0xff]
      %v285 = vld [vmem:[%s1 + $0xa8] sm:$0xff]
      %v286 = vld [vmem:[%s1 + $0xb0] sm:$0xff]
      %v287 = vld [vmem:[%s1 + $0xb8] sm:$0xff]
      %v288 = vld [vmem:[%s1 + $0xc0] sm:$0xff]
      %v289 = vld [vmem:[%s1 + $0xc8] sm:$0xff]
      %v290 = vld [vmem:[%s1 + $0xd0] sm:$0xff]
      %v291 = vld [vmem:[%s1 + $0xd8] sm:$0xff]
      %v292 = vld [vmem:[%s1 + $0xe0] sm:$0xff]
      %v293 = vld [vmem:[%s1 + $0xe8] sm:$0xff]
      %v294 = vld [vmem:[%s1 + $0xf0] sm:$0xff]
      %v295 = vld [vmem:[%s1 + $0xf8] sm:$0xff]
      %296 = vmatpush.msra.mxu0 %v279
      %297 = vmatpush.msra.mxu0 %v278
      %298 = vmatpush.msra.mxu0 %v277
      %299 = vmatpush.msra.mxu0 %v276
      %300 = vmatpush.msra.mxu0 %v275
      %301 = vmatpush.msra.mxu0 %v274
      %302 = vmatpush.msra.mxu0 %v273
      %303 = vmatpush.msra.mxu0 %v272
      %304 = vmatpush.msra.mxu0 %v271
      %305 = vmatpush.msra.mxu0 %v270
      %306 = vmatpush.msra.mxu0 %v269
      %307 = vmatpush.msra.mxu0 %v268
      %308 = vmatpush.msra.mxu0 %v267
      %309 = vmatpush.msra.mxu0 %v266
      %310 = vmatpush.msra.mxu0 %v265
      %311 = vmatpush.msra.mxu0 %v264
      %312 = vmatmul.f32.gmra.mxu0 %v240
      %v313 = vpop.f32.mrf.mxu0
      %v314 = vadd.f32 0.0, %v313
      %315 = vmatmul.f32.gmra.mxu0 %v242
      %v316 = vpop.f32.mrf.mxu0
      %v317 = vadd.f32 0.0, %v316
      %318 = vmatmul.f32.gmra.mxu0 %v244
      %v319 = vpop.f32.mrf.mxu0
      %v320 = vadd.f32 0.0, %v319
      %321 = vmatmul.f32.gmra.mxu0 %v246
      %v322 = vpop.f32.mrf.mxu0
      %v323 = vadd.f32 0.0, %v322
      %324 = vmatmul.f32.gmra.mxu0 %v248
      %v325 = vpop.f32.mrf.mxu0
      %v326 = vadd.f32 0.0, %v325
      %327 = vmatmul.f32.gmra.mxu0 %v250
      %v328 = vpop.f32.mrf.mxu0
      %v329 = vadd.f32 0.0, %v328
      %330 = vmatmul.f32.gmra.mxu0 %v252
      %v331 = vpop.f32.mrf.mxu0
      %v332 = vadd.f32 0.0, %v331
      %333 = vmatmul.f32.gmra.mxu0 %v254
      %v334 = vpop.f32.mrf.mxu0
      %v335 = vadd.f32 0.0, %v334
      %336 = vmatmul.f32.gmra.mxu0 %v256
      %v337 = vpop.f32.mrf.mxu0
      %v338 = vadd.f32 0.0, %v337
      %339 = vmatmul.f32.gmra.mxu0 %v258
      %v340 = vpop.f32.mrf.mxu0
      %v341 = vadd.f32 0.0, %v340
      %342 = vmatmul.f32.gmra.mxu0 %v260
      %v343 = vpop.f32.mrf.mxu0
      %v344 = vadd.f32 0.0, %v343
      %345 = vmatmul.f32.gmra.mxu0 %v262
      %v346 = vpop.f32.mrf.mxu0
      %v347 = vadd.f32 0.0, %v346
      %348 = vdwg.mxu0
      %349 = vmatpush.msra.mxu0 %v295
      %350 = vmatpush.msra.mxu0 %v294
      %351 = vmatpush.msra.mxu0 %v293
      %352 = vmatpush.msra.mxu0 %v292
      %353 = vmatpush.msra.mxu0 %v291
      %354 = vmatpush.msra.mxu0 %v290
      %355 = vmatpush.msra.mxu0 %v289
      %356 = vmatpush.msra.mxu0 %v288
      %357 = vmatpush.msra.mxu0 %v287
      %358 = vmatpush.msra.mxu0 %v286
      %359 = vmatpush.msra.mxu0 %v285
      %360 = vmatpush.msra.mxu0 %v284
      %361 = vmatpush.msra.mxu0 %v283
      %362 = vmatpush.msra.mxu0 %v282
      %363 = vmatpush.msra.mxu0 %v281
      %364 = vmatpush.msra.mxu0 %v280
      %365 = vmatmul.f32.gmra.mxu0 %v241
      %v366 = vpop.f32.mrf.mxu0
      %v367 = vadd.f32 %v314, %v366
      %368 = vmatmul.f32.gmra.mxu0 %v243
      %v369 = vpop.f32.mrf.mxu0
      %v370 = vadd.f32 %v317, %v369
      %371 = vmatmul.f32.gmra.mxu0 %v245
      %v372 = vpop.f32.mrf.mxu0
      %v373 = vadd.f32 %v320, %v372
      %374 = vmatmul.f32.gmra.mxu0 %v247
      %v375 = vpop.f32.mrf.mxu0
      %v376 = vadd.f32 %v323, %v375
      %377 = vmatmul.f32.gmra.mxu0 %v249
      %v378 = vpop.f32.mrf.mxu0
      %v379 = vadd.f32 %v326, %v378
      %380 = vmatmul.f32.gmra.mxu0 %v251
      %v381 = vpop.f32.mrf.mxu0
      %v382 = vadd.f32 %v329, %v381
      %383 = vmatmul.f32.gmra.mxu0 %v253
      %v384 = vpop.f32.mrf.mxu0
      %v385 = vadd.f32 %v332, %v384
      %386 = vmatmul.f32.gmra.mxu0 %v255
      %v387 = vpop.f32.mrf.mxu0
      %v388 = vadd.f32 %v335, %v387
      %389 = vmatmul.f32.gmra.mxu0 %v257
      %v390 = vpop.f32.mrf.mxu0
      %v391 = vadd.f32 %v338, %v390
      %392 = vmatmul.f32.gmra.mxu0 %v259
      %v393 = vpop.f32.mrf.mxu0
      %v394 = vadd.f32 %v341, %v393
      %395 = vmatmul.f32.gmra.mxu0 %v261
      %v396 = vpop.f32.mrf.mxu0
      %v397 = vadd.f32 %v344, %v396
      %398 = vmatmul.f32.gmra.mxu0 %v263
      %v399 = vpop.f32.mrf.mxu0
      %v400 = vadd.f32 %v347, %v399
      %401 = vdwg.mxu0
      %v402 = vld [vmem:[%s226] sm:$0xff]
      %v403 = vld [vmem:[%s226 + $0x8] sm:$0xff]
      %v404 = vld [vmem:[%s226 + $0x10] sm:$0xff]
      %v405 = vld [vmem:[%s226 + $0x18] sm:$0xff]
      %v406 = vld [vmem:[%s226 + $0x20] sm:$0xff]
      %v407 = vld [vmem:[%s226 + $0x28] sm:$0xff]
      %v408 = vld [vmem:[%s226 + $0x30] sm:$0xff]
      %v409 = vld [vmem:[%s226 + $0x38] sm:$0xff]
      %v410 = vld [vmem:[%s226 + $0x40] sm:$0xff]
      %v411 = vld [vmem:[%s226 + $0x48] sm:$0xff]
      %v412 = vld [vmem:[%s226 + $0x50] sm:$0xff]
      %v413 = vld [vmem:[%s226 + $0x58] sm:$0xff]
      %v414 = vmul.f32 %v367, 1.442695
      %v415 = vpow.pop %v414
      %v416 = vmul.f32 %v370, 1.442695
      %v417 = vpow.pop %v416
      %v418 = vmul.f32 %v373, 1.442695
      %v419 = vpow.pop %v418
      %v420 = vmul.f32 %v376, 1.442695
      %v421 = vpow.pop %v420
      %v422 = vmul.f32 %v379, 1.442695
      %v423 = vpow.pop %v422
      %v424 = vmul.f32 %v382, 1.442695
      %v425 = vpow.pop %v424
      %v426 = vmul.f32 %v385, 1.442695
      %v427 = vpow.pop %v426
      %v428 = vmul.f32 %v388, 1.442695
      %v429 = vpow.pop %v428
      %v430 = vmul.f32 %v391, 1.442695
      %v431 = vpow.pop %v430
      %v432 = vmul.f32 %v394, 1.442695
      %v433 = vpow.pop %v432
      %v434 = vmul.f32 %v397, 1.442695
      %v435 = vpow.pop %v434
      %v436 = vmul.f32 %v400, 1.442695
      %v437 = vpow.pop %v436
      %450 = vrot.lane.b32.xlu0 %v415, 96
      %v451 = vpop.permute.xlu0 %450
      %452 = vrot.lane.b32.xlu0 %v417, 96
      %v453 = vpop.permute.xlu0 %452
      %454 = vrot.lane.b32.xlu0 %v419, 96
      %v455 = vpop.permute.xlu0 %454
      %456 = vrot.lane.b32.xlu0 %v421, 96
      %v457 = vpop.permute.xlu0 %456
      %458 = vrot.lane.b32.xlu0 %v423, 96
      %v459 = vpop.permute.xlu0 %458
      %460 = vrot.lane.b32.xlu0 %v425, 96
      %v461 = vpop.permute.xlu0 %460
      %462 = vrot.lane.b32.xlu0 %v427, 96
      %v463 = vpop.permute.xlu0 %462
      %464 = vrot.lane.b32.xlu0 %v429, 96
      %v465 = vpop.permute.xlu0 %464
      %466 = vrot.lane.b32.xlu0 %v431, 96
      %v467 = vpop.permute.xlu0 %466
      %468 = vrot.lane.b32.xlu0 %v433, 96
      %v469 = vpop.permute.xlu0 %468
      %470 = vrot.lane.b32.xlu0 %v435, 96
      %v471 = vpop.permute.xlu0 %470
      %472 = vrot.lane.b32.xlu0 %v437, 96
      %v473 = vpop.permute.xlu0 %472
      %v486 = vmul.f32 %v402, %v451
      %v487 = vmul.f32 %v403, %v453
      %v488 = vmul.f32 %v404, %v455
      %v489 = vmul.f32 %v405, %v457
      %v490 = vmul.f32 %v406, %v459
      %v491 = vmul.f32 %v407, %v461
      %v492 = vmul.f32 %v408, %v463
      %v493 = vmul.f32 %v409, %v465
      %v494 = vmul.f32 %v410, %v467
      %v495 = vmul.f32 %v411, %v469
      %v496 = vmul.f32 %v412, %v471
      %v497 = vmul.f32 %v413, %v473
      %v498 = vadd.f32 %v486, %v367
      %v499 = vadd.f32 %v487, %v370
      %v500 = vadd.f32 %v488, %v373
      %v501 = vadd.f32 %v489, %v376
      %v502 = vadd.f32 %v490, %v379
      %v503 = vadd.f32 %v491, %v382
      %v504 = vadd.f32 %v492, %v385
      %v505 = vadd.f32 %v493, %v388
      %v506 = vadd.f32 %v494, %v391
      %v507 = vadd.f32 %v495, %v394
      %v508 = vadd.f32 %v496, %v397
      %v509 = vadd.f32 %v497, %v400
      %vm510 = vcmask 261120
      %511 = vst.msk [vmem:[%s232] sm:$0xff] %vm510, %v498
      %512 = vst.msk [vmem:[%s232 + $0x8] sm:$0xff] %vm510, %v499
      %513 = vst.msk [vmem:[%s232 + $0x10] sm:$0xff] %vm510, %v500
      %514 = vst.msk [vmem:[%s232 + $0x18] sm:$0xff] %vm510, %v501
      %515 = vst.msk [vmem:[%s232 + $0x20] sm:$0xff] %vm510, %v502
      %516 = vst.msk [vmem:[%s232 + $0x28] sm:$0xff] %vm510, %v503
      %517 = vst.msk [vmem:[%s232 + $0x30] sm:$0xff] %vm510, %v504
      %518 = vst.msk [vmem:[%s232 + $0x38] sm:$0xff] %vm510, %v505
      %519 = vst.msk [vmem:[%s232 + $0x40] sm:$0xff] %vm510, %v506
      %520 = vst.msk [vmem:[%s232 + $0x48] sm:$0xff] %vm510, %v507
      %521 = vst.msk [vmem:[%s232 + $0x50] sm:$0xff] %vm510, %v508
      %522 = vst.msk [vmem:[%s232 + $0x58] sm:$0xff] %vm510, %v509
      %523 = vst.msk [vmem:[%s238] sm:$0xff] %vm510, %v498
      %524 = vst.msk [vmem:[%s238 + $0x8] sm:$0xff] %vm510, %v499
      %525 = vst.msk [vmem:[%s238 + $0x10] sm:$0xff] %vm510, %v500
      %526 = vst.msk [vmem:[%s238 + $0x18] sm:$0xff] %vm510, %v501
      %527 = vst.msk [vmem:[%s238 + $0x20] sm:$0xff] %vm510, %v502
      %528 = vst.msk [vmem:[%s238 + $0x28] sm:$0xff] %vm510, %v503
      %529 = vst.msk [vmem:[%s238 + $0x30] sm:$0xff] %vm510, %v504
      %530 = vst.msk [vmem:[%s238 + $0x38] sm:$0xff] %vm510, %v505
      %531 = vst.msk [vmem:[%s238 + $0x40] sm:$0xff] %vm510, %v506
      %532 = vst.msk [vmem:[%s238 + $0x48] sm:$0xff] %vm510, %v507
      %533 = vst.msk [vmem:[%s238 + $0x50] sm:$0xff] %vm510, %v508
      %534 = vst.msk [vmem:[%s238 + $0x58] sm:$0xff] %vm510, %v509
      %s535 = smul.u32 12, %s16
      %p536 = scmp.lt.s32.totalorder %s535, 23
      %s537 = scalar_select %p536, %s535, 23
      %s538 = smul.addr %s537, 8
      %s539 = scalar_lea.vmem %s3, %s538
      %s540 = smul.u32 12, %s16
      %p541 = scmp.lt.s32.totalorder %s540, 23
      %s542 = scalar_select %p541, %s540, 23
      %s543 = smul.addr %s542, 8
      %s544 = scalar_lea.vmem %s4, %s543
      // Predicated region
      $region33: #{vbgae_adj_forward.6} parent=31 // pred_check
        %p545 = pneg %p107
      $region34: #{vbgae_adj_forward.6} parent=31 // pred_check_branch
        %547 = sbr.rel (%p545) target = $region36
      $region35: #{vbgae_adj_forward.6} parent=31 // pred_region
        %s548 = smul.u32 12, %s16
      $region36: #{vbgae_adj_forward.6} parent=31 // pred_fallthru
        _
      // Predicated region
      $region37: #{vbgae_adj_forward.6} parent=31 // pred_check
        %p549 = pneg %p133
      $region38: #{vbgae_adj_forward.6} parent=31 // pred_check_branch
        %551 = sbr.rel (%p549) target = $region40
      $region39: #{vbgae_adj_forward.6} parent=31 // pred_region
        %s552 = smul.u32 12, %s16
      $region40: #{vbgae_adj_forward.6} parent=31 // pred_fallthru
        _
    $region32: #{vbgae_adj_forward.6} parent=5 // pred_fallthru
      _
    %p553 = scmp.le.s32.totalorder 2, %s11
    // Predicated region
    $region41: #{vbgae_adj_forward.6} parent=5 // pred_check
      %p554 = pneg %p553
    $region42: #{vbgae_adj_forward.6} parent=5 // pred_check_branch
      %556 = sbr.rel (%p554) target = $region44
    $region43: #{vbgae_adj_forward.6} parent=5 // pred_region
      %s557 = ssub.s32 %s11, 2
      // Predicated region
      $region45: #{vbgae_adj_forward.6} parent=43 // pred_check
        %p558 = pneg %p113
      $region46: #{vbgae_adj_forward.6} parent=43 // pred_check_branch
        %560 = sbr.rel (%p558) target = $region48
      $region47: #{vbgae_adj_forward.6} parent=43 // pred_region
        %s561 = smul.u32 12, %s17
        %p562 = scmp.lt.s32.totalorder %s561, 23
        %s563 = scalar_select %p562, %s561, 23
        %s564 = smul.addr %s563, 8
        %s565 = scalar_lea.vmem %s3, %s564
      $region48: #{vbgae_adj_forward.6} parent=43 // pred_fallthru
        _
      // Predicated region
      $region49: #{vbgae_adj_forward.6} parent=43 // pred_check
        %p566 = pneg %p139
      $region50: #{vbgae_adj_forward.6} parent=43 // pred_check_branch
        %568 = sbr.rel (%p566) target = $region52
      $region51: #{vbgae_adj_forward.6} parent=43 // pred_region
        %s569 = smul.u32 12, %s17
        %p570 = scmp.lt.s32.totalorder %s569, 23
        %s571 = scalar_select %p570, %s569, 23
        %s572 = smul.addr %s571, 8
        %s573 = scalar_lea.vmem %s4, %s572
      $region52: #{vbgae_adj_forward.6} parent=43 // pred_fallthru
        _
    $region44: #{vbgae_adj_forward.6} parent=5 // pred_fallthru
      _
  $region6: #{vbgae_adj_forward.6} parent=0 // loop_footer
    %s15 = sadd.s32 1, %s11
  $region7: #{vbgae_adj_forward.6} parent=0 // loop_footer_branch
    %10 = sbr.rel target = $region3
  $region8: #{vbgae_adj_forward.6} parent=0 // loop_exit
    _

// kernel: vbgae_adj_forward.5
$region0: #{vbgae_adj_forward.5}
  #allocation0 [shape = 'u32[]', space=smem, size = 0x4, offset = 0x4, fixed_abs, tag = 'smem constant byte address 0x4 - core index']
  #allocation1 [shape = 'u32[72,128]{1,0:T(1,128)}', space=vmem, size = 0x9000, scoped, tag = 'internal scratch']
  %s0 = inlined_call_operand.vmem [shape: f32[256,192], index: 0, kind: input, shape index: {}]
  %s1 = inlined_call_operand.vmem [shape: f32[192,128], index: 1, kind: input, shape index: {}]
  %s2 = inlined_call_operand.vmem [shape: f32[256,32], index: 2, kind: input, shape index: {}]
  %s3 = inlined_call_operand.vmem [shape: f32[256,64], index: 3, kind: output, shape index: {0}]
  %s4 = inlined_call_operand.vmem [shape: f32[256,32], index: 4, kind: output, shape index: {1}]
  %s5 = inlined_call_operand.vmem [shape: f32[256,32], index: 5, kind: output, shape index: {2}]
  %6 = xla_tuple %s3, %s4, %s5
  %s7 = sld [smem:[#allocation0]]
  $region61: #{vbgae_adj_forward.5} parent=0
    _
  %s9 = ssub.s32 1, %s7
  %s10 = scalar_select 0, %s9, %s7
  loop: start=0, step=1, limit=4
  $region2: #{vbgae_adj_forward.5} parent=0 // loop_pre_header
    _
  $region3: #{vbgae_adj_forward.5} parent=0 // loop_header
    %s12 = sphi 0, %s16
    %p13 = scmp.ge.s32.totalorder %s12, 4
    %s22 = sphi 0, %s24
    %s25 = sphi 0, %s22
    %s26 = sphi 0, %s25
    %s42 = sphi 0, %s26
    %s46 = sphi 0, %s46
    %s48 = sphi 0, %s46
    %s49 = sphi 0, %s48
    %s63 = sphi 0, %s49
    %s69 = sphi 0, %s71
    %s72 = sphi 0, %s69
    %s73 = sphi 0, %s72
    %s89 = sphi 0, %s73
    %s95 = sphi 0, %s97
    %s98 = sphi 0, %s95
    %s99 = sphi 0, %s98
    %s115 = sphi 0, %s99
    %s121 = sphi 0, %s123
    %s124 = sphi 0, %s121
    %s125 = sphi 0, %s124
    %s141 = sphi 0, %s125
    %s147 = sphi 0, %s149
    %s150 = sphi 0, %s147
    %s151 = sphi 0, %s150
    %s167 = sphi 0, %s151
  $region4: #{vbgae_adj_forward.5} parent=0 // loop_header_branch
    %15 = sbr.rel (%p13) target = $region8
  $region5: #{vbgae_adj_forward.5} parent=0 // loop_body
    %s17 = ssub.s32 %s12, 1
    %s18 = ssub.s32 %s12, 2
    %s19 = sadd.s32 %s12, 1
    %s20 = ssub.s32 %s12, %s19
    %p21 = scmp.eq.s32.totalorder %s20, 0
    %s23 = sadd.s32 %s22, 1
    %s24 = scalar_select %p21, %s22, %s23
    %p27 = pneg %p21
    %p28 = scmp.eq.s32.totalorder %s12, 1
    %p29 = por %p27, %p28
    %p30 = scmp.ne.s32.totalorder %s22, %s25
    %p31 = scmp.eq.s32.totalorder %s12, 0
    %p32 = por %p30, %p31
    %p33 = scmp.ne.s32.totalorder %s22, %s25
    %p34 = scmp.eq.s32.totalorder %s17, 1
    %p35 = por %p33, %p34
    %p36 = scmp.ne.s32.totalorder %s25, %s26
    %p37 = scmp.eq.s32.totalorder %s17, 0
    %p38 = por %p36, %p37
    %p39 = scmp.ne.s32.totalorder %s25, %s26
    %p40 = scmp.eq.s32.totalorder %s18, 1
    %p41 = por %p39, %p40
    %p43 = scmp.ne.s32.totalorder %s26, %s42
    %p44 = scmp.eq.s32.totalorder %s18, 0
    %p45 = por %p43, %p44
    %s47 = sadd.s32 %s46, 1
    %p50 = scmp.eq.s32.totalorder %s12, 1
    %p51 = scmp.ne.s32.totalorder %s46, %s48
    %p52 = scmp.eq.s32.totalorder %s12, 0
    %p53 = por %p51, %p52
    %p54 = scmp.ne.s32.totalorder %s46, %s48
    %p55 = scmp.eq.s32.totalorder %s17, 1
    %p56 = por %p54, %p55
    %p57 = scmp.ne.s32.totalorder %s48, %s49
    %p58 = scmp.eq.s32.totalorder %s17, 0
    %p59 = por %p57, %p58
    %p60 = scmp.ne.s32.totalorder %s48, %s49
    %p61 = scmp.eq.s32.totalorder %s18, 1
    %p62 = por %p60, %p61
    %p64 = scmp.ne.s32.totalorder %s49, %s63
    %p65 = scmp.eq.s32.totalorder %s18, 0
    %p66 = por %p64, %p65
    %s67 = ssub.s32 %s12, %s19
    %p68 = scmp.eq.s32.totalorder %s67, 0
    %s70 = sadd.s32 %s69, 1
    %s71 = scalar_select %p68, %s69, %s70
    %p74 = pneg %p68
    %p75 = scmp.eq.s32.totalorder %s12, 1
    %p76 = por %p74, %p75
    %p77 = scmp.ne.s32.totalorder %s69, %s72
    %p78 = scmp.eq.s32.totalorder %s12, 0
    %p79 = por %p77, %p78
    %p80 = scmp.ne.s32.totalorder %s69, %s72
    %p81 = scmp.eq.s32.totalorder %s17, 1
    %p82 = por %p80, %p81
    %p83 = scmp.ne.s32.totalorder %s72, %s73
    %p84 = scmp.eq.s32.totalorder %s17, 0
    %p85 = por %p83, %p84
    %p86 = scmp.ne.s32.totalorder %s72, %s73
    %p87 = scmp.eq.s32.totalorder %s18, 1
    %p88 = por %p86, %p87
    %p90 = scmp.ne.s32.totalorder %s73, %s89
    %p91 = scmp.eq.s32.totalorder %s18, 0
    %p92 = por %p90, %p91
    %s93 = ssub.s32 %s12, %s19
    %p94 = scmp.eq.s32.totalorder %s93, 0
    %s96 = sadd.s32 %s95, 1
    %s97 = scalar_select %p94, %s95, %s96
    %p100 = pneg %p94
    %p101 = scmp.eq.s32.totalorder %s12, 1
    %p102 = por %p100, %p101
    %p103 = scmp.ne.s32.totalorder %s95, %s98
    %p104 = scmp.eq.s32.totalorder %s12, 0
    %p105 = por %p103, %p104
    %p106 = scmp.ne.s32.totalorder %s95, %s98
    %p107 = scmp.eq.s32.totalorder %s17, 1
    %p108 = por %p106, %p107
    %p109 = scmp.ne.s32.totalorder %s98, %s99
    %p110 = scmp.eq.s32.totalorder %s17, 0
    %p111 = por %p109, %p110
    %p112 = scmp.ne.s32.totalorder %s98, %s99
    %p113 = scmp.eq.s32.totalorder %s18, 1
    %p114 = por %p112, %p113
    %p116 = scmp.ne.s32.totalorder %s99, %s115
    %p117 = scmp.eq.s32.totalorder %s18, 0
    %p118 = por %p116, %p117
    %s119 = ssub.s32 %s12, %s19
    %p120 = scmp.eq.s32.totalorder %s119, 0
    %s122 = sadd.s32 %s121, 1
    %s123 = scalar_select %p120, %s121, %s122
    %p126 = pneg %p120
    %p127 = scmp.eq.s32.totalorder %s12, 1
    %p128 = por %p126, %p127
    %p129 = scmp.ne.s32.totalorder %s121, %s124
    %p130 = scmp.eq.s32.totalorder %s12, 0
    %p131 = por %p129, %p130
    %p132 = scmp.ne.s32.totalorder %s121, %s124
    %p133 = scmp.eq.s32.totalorder %s17, 1
    %p134 = por %p132, %p133
    %p135 = scmp.ne.s32.totalorder %s124, %s125
    %p136 = scmp.eq.s32.totalorder %s17, 0
    %p137 = por %p135, %p136
    %p138 = scmp.ne.s32.totalorder %s124, %s125
    %p139 = scmp.eq.s32.totalorder %s18, 1
    %p140 = por %p138, %p139
    %p142 = scmp.ne.s32.totalorder %s125, %s141
    %p143 = scmp.eq.s32.totalorder %s18, 0
    %p144 = por %p142, %p143
    %s145 = ssub.s32 %s12, %s19
    %p146 = scmp.eq.s32.totalorder %s145, 0
    %s148 = sadd.s32 %s147, 1
    %s149 = scalar_select %p146, %s147, %s148
    %p152 = pneg %p146
    %p153 = scmp.eq.s32.totalorder %s12, 1
    %p154 = por %p152, %p153
    %p155 = scmp.ne.s32.totalorder %s147, %s150
    %p156 = scmp.eq.s32.totalorder %s12, 0
    %p157 = por %p155, %p156
    %p158 = scmp.ne.s32.totalorder %s147, %s150
    %p159 = scmp.eq.s32.totalorder %s17, 1
    %p160 = por %p158, %p159
    %p161 = scmp.ne.s32.totalorder %s150, %s151
    %p162 = scmp.eq.s32.totalorder %s17, 0
    %p163 = por %p161, %p162
    %p164 = scmp.ne.s32.totalorder %s150, %s151
    %p165 = scmp.eq.s32.totalorder %s18, 1
    %p166 = por %p164, %p165
    %p168 = scmp.ne.s32.totalorder %s151, %s167
    %p169 = scmp.eq.s32.totalorder %s18, 0
    %p170 = por %p168, %p169
    %p171 = scmp.le.s32.totalorder 1, %s12
    %p172 = scmp.lt.s32.totalorder %s12, 3
    %p173 = pnand %p171, %p172
    %p174 = pneg %p173
    // Predicated region
    $region9: #{vbgae_adj_forward.5} parent=5 // pred_check
      _
    $region10: #{vbgae_adj_forward.5} parent=5 // pred_check_branch
      %176 = sbr.rel (%p173) target = $region12
    $region11: #{vbgae_adj_forward.5} parent=5 // pred_region
      %s177 = ssub.s32 %s12, 1
      // Predicated region
      $region13: #{vbgae_adj_forward.5} parent=11 // pred_check
        %p178 = pneg %p59
      $region14: #{vbgae_adj_forward.5} parent=11 // pred_check_branch
        %180 = sbr.rel (%p178) target = $region16
      $region15: #{vbgae_adj_forward.5} parent=11 // pred_region
        _
      $region16: #{vbgae_adj_forward.5} parent=11 // pred_fallthru
        _
    $region12: #{vbgae_adj_forward.5} parent=5 // pred_fallthru
      _
    %p181 = scmp.lt.s32.totalorder %s12, 2
    // Predicated region
    $region17: #{vbgae_adj_forward.5} parent=5 // pred_check
      %p182 = pneg %p181
    $region18: #{vbgae_adj_forward.5} parent=5 // pred_check_branch
      %184 = sbr.rel (%p182) target = $region20
    $region19: #{vbgae_adj_forward.5} parent=5 // pred_region
      // Predicated region
      $region21: #{vbgae_adj_forward.5} parent=19 // pred_check
        %p185 = pneg %p32
      $region22: #{vbgae_adj_forward.5} parent=19 // pred_check_branch
        %187 = sbr.rel (%p185) target = $region24
      $region23: #{vbgae_adj_forward.5} parent=19 // pred_region
        %s188 = smul.u32 16, %s12
        %p189 = scmp.lt.s32.totalorder %s188, 31
        %s190 = scalar_select %p189, %s188, 31
        %s191 = smul.addr %s190, 2
        %s192 = smul.addr %s191, 8
        %s193 = scalar_lea.vmem %s0, %s192
        %s194 = smul.u32 16, %s12
      $region24: #{vbgae_adj_forward.5} parent=19 // pred_fallthru
        _
      // Predicated region
      $region25: #{vbgae_adj_forward.5} parent=19 // pred_check
        %p195 = pneg %p79
      $region26: #{vbgae_adj_forward.5} parent=19 // pred_check_branch
        %197 = sbr.rel (%p195) target = $region28
      $region27: #{vbgae_adj_forward.5} parent=19 // pred_region
        %s198 = smul.u32 16, %s12
        %p199 = scmp.lt.s32.totalorder %s198, 31
        %s200 = scalar_select %p199, %s198, 31
        %s201 = smul.addr %s200, 8
        %s202 = scalar_lea.vmem %s2, %s201
        %s203 = smul.u32 16, %s12
      $region28: #{vbgae_adj_forward.5} parent=19 // pred_fallthru
        _
    $region20: #{vbgae_adj_forward.5} parent=5 // pred_fallthru
      _
    %p204 = scmp.le.s32.totalorder 1, %s12
    %p205 = scmp.lt.s32.totalorder %s12, 3
    %p206 = pnand %p204, %p205
    %p207 = pneg %p206
    // Predicated region
    $region29: #{vbgae_adj_forward.5} parent=5 // pred_check
      _
    $region30: #{vbgae_adj_forward.5} parent=5 // pred_check_branch
      %209 = sbr.rel (%p206) target = $region32
    $region31: #{vbgae_adj_forward.5} parent=5 // pred_region
      %s210 = ssub.s32 %s12, 1
      %s211 = smul.u32 16, %s17
      %p212 = scmp.lt.s32.totalorder %s211, 31
      %s213 = scalar_select %p212, %s211, 31
      %s214 = smul.addr %s213, 2
      %s215 = smul.addr %s214, 8
      %s216 = scalar_lea.vmem %s0, %s215
      %p217 = pneg %p38
      %p218 = pneg %p35
      %p219 = pneg %p59
      %p220 = pneg %p56
      %s221 = smul.u32 16, %s17
      %p222 = scmp.lt.s32.totalorder %s221, 31
      %s223 = scalar_select %p222, %s221, 31
      %s224 = smul.addr %s223, 8
      %s225 = scalar_lea.vmem %s2, %s224
      %p226 = pneg %p85
      %p227 = pneg %p82
      %p228 = pneg %p111
      %p229 = pneg %p108
      %s230 = smul.u32 16, %s17
      %p231 = scmp.lt.s32.totalorder %s230, 31
      %s232 = scalar_select %p231, %s230, 31
      %s233 = smul.addr %s232, 8
      %s234 = scalar_lea.vmem %s3, %s233
      %p235 = pneg %p137
      %p236 = pneg %p134
      %s237 = smul.u32 16, %s17
      %p238 = scmp.lt.s32.totalorder %s237, 31
      %s239 = scalar_select %p238, %s237, 31
      %s240 = smul.addr %s239, 8
      %s241 = scalar_lea.vmem %s4, %s240
      %p242 = pneg %p163
      %p243 = pneg %p160
      %s244 = smul.u32 16, %s17
      %p245 = scmp.lt.s32.totalorder %s244, 31
      %s246 = scalar_select %p245, %s244, 31
      %s247 = smul.addr %s246, 8
      %s248 = scalar_lea.vmem %s5, %s247
      %s249 = smul.u32 16, %s17
      %p250 = scmp.lt.s32.totalorder %s249, 31
      %s251 = scalar_select %p250, %s249, 31
      %s252 = smul.addr %s251, 2
      %s253 = smul.addr %s252, 8
      %s254 = scalar_lea.vmem %s0, %s253
      %s255 = smul.u32 16, %s17
      %s256 = smul.u32 16, %s17
      %p257 = scmp.lt.s32.totalorder %s256, 31
      %s258 = scalar_select %p257, %s256, 31
      %s259 = smul.addr %s258, 8
      %s260 = scalar_lea.vmem %s2, %s259
      %s261 = smul.u32 16, %s17
      %s262 = smul.u32 16, %s17
      %p263 = scmp.lt.s32.totalorder %s262, 31
      %s264 = scalar_select %p263, %s262, 31
      %s265 = smul.addr %s264, 8
      %s266 = scalar_lea.vmem %s3, %s265
      %s267 = smul.u32 16, %s17
      %s268 = smul.u32 16, %s17
      %p269 = scmp.lt.s32.totalorder %s268, 31
      %s270 = scalar_select %p269, %s268, 31
      %s271 = smul.addr %s270, 8
      %s272 = scalar_lea.vmem %s4, %s271
      %s273 = smul.u32 16, %s17
      %s274 = smul.u32 16, %s17
      %p275 = scmp.lt.s32.totalorder %s274, 31
      %s276 = scalar_select %p275, %s274, 31
      %s277 = smul.addr %s276, 8
      %s278 = scalar_lea.vmem %s5, %s277
      %s279 = smul.u32 16, %s17
      %v280 = vld [vmem:[%s254] sm:$0xff]
      %v281 = vld [vmem:[%s254 + $0x8] sm:$0xff]
      %v282 = vld [vmem:[%s254 + $0x10] sm:$0xff]
      %v283 = vld [vmem:[%s254 + $0x18] sm:$0xff]
      %v284 = vld [vmem:[%s254 + $0x20] sm:$0xff]
      %v285 = vld [vmem:[%s254 + $0x28] sm:$0xff]
      %v286 = vld [vmem:[%s254 + $0x30] sm:$0xff]
      %v287 = vld [vmem:[%s254 + $0x38] sm:$0xff]
      %v288 = vld [vmem:[%s254 + $0x40] sm:$0xff]
      %v289 = vld [vmem:[%s254 + $0x48] sm:$0xff]
      %v290 = vld [vmem:[%s254 + $0x50] sm:$0xff]
      %v291 = vld [vmem:[%s254 + $0x58] sm:$0xff]
      %v292 = vld [vmem:[%s254 + $0x60] sm:$0xff]
      %v293 = vld [vmem:[%s254 + $0x68] sm:$0xff]
      %v294 = vld [vmem:[%s254 + $0x70] sm:$0xff]
      %v295 = vld [vmem:[%s254 + $0x78] sm:$0xff]
      %v296 = vld [vmem:[%s254 + $0x80] sm:$0xff]
      %v297 = vld [vmem:[%s254 + $0x88] sm:$0xff]
      %v298 = vld [vmem:[%s254 + $0x90] sm:$0xff]
      %v299 = vld [vmem:[%s254 + $0x98] sm:$0xff]
      %v300 = vld [vmem:[%s254 + $0xa0] sm:$0xff]
      %v301 = vld [vmem:[%s254 + $0xa8] sm:$0xff]
      %v302 = vld [vmem:[%s254 + $0xb0] sm:$0xff]
      %v303 = vld [vmem:[%s254 + $0xb8] sm:$0xff]
      %v304 = vld [vmem:[%s254 + $0xc0] sm:$0xff]
      %v305 = vld [vmem:[%s254 + $0xc8] sm:$0xff]
      %v306 = vld [vmem:[%s254 + $0xd0] sm:$0xff]
      %v307 = vld [vmem:[%s254 + $0xd8] sm:$0xff]
      %v308 = vld [vmem:[%s254 + $0xe0] sm:$0xff]
      %v309 = vld [vmem:[%s254 + $0xe8] sm:$0xff]
      %v310 = vld [vmem:[%s254 + $0xf0] sm:$0xff]
      %v311 = vld [vmem:[%s254 + $0xf8] sm:$0xff]
      %v312 = vld [vmem:[%s1] sm:$0xff]
      %v313 = vld [vmem:[%s1 + $0x8] sm:$0xff]
      %v314 = vld [vmem:[%s1 + $0x10] sm:$0xff]
      %v315 = vld [vmem:[%s1 + $0x18] sm:$0xff]
      %v316 = vld [vmem:[%s1 + $0x20] sm:$0xff]
      %v317 = vld [vmem:[%s1 + $0x28] sm:$0xff]
      %v318 = vld [vmem:[%s1 + $0x30] sm:$0xff]
      %v319 = vld [vmem:[%s1 + $0x38] sm:$0xff]
      %v320 = vld [vmem:[%s1 + $0x40] sm:$0xff]
      %v321 = vld [vmem:[%s1 + $0x48] sm:$0xff]
      %v322 = vld [vmem:[%s1 + $0x50] sm:$0xff]
      %v323 = vld [vmem:[%s1 + $0x58] sm:$0xff]
      %v324 = vld [vmem:[%s1 + $0x60] sm:$0xff]
      %v325 = vld [vmem:[%s1 + $0x68] sm:$0xff]
      %v326 = vld [vmem:[%s1 + $0x70] sm:$0xff]
      %v327 = vld [vmem:[%s1 + $0x78] sm:$0xff]
      %v328 = vld [vmem:[%s1 + $0x80] sm:$0xff]
      %v329 = vld [vmem:[%s1 + $0x88] sm:$0xff]
      %v330 = vld [vmem:[%s1 + $0x90] sm:$0xff]
      %v331 = vld [vmem:[%s1 + $0x98] sm:$0xff]
      %v332 = vld [vmem:[%s1 + $0xa0] sm:$0xff]
      %v333 = vld [vmem:[%s1 + $0xa8] sm:$0xff]
      %v334 = vld [vmem:[%s1 + $0xb0] sm:$0xff]
      %v335 = vld [vmem:[%s1 + $0xb8] sm:$0xff]
      %vm336 = vcmask 523264
      %v338 = vsel %vm336, %v281, 0
      %v341 = vsel %vm336, %v283, 0
      %v344 = vsel %vm336, %v285, 0
      %v347 = vsel %vm336, %v287, 0
      %v350 = vsel %vm336, %v289, 0
      %v353 = vsel %vm336, %v291, 0
      %v356 = vsel %vm336, %v293, 0
      %v359 = vsel %vm336, %v295, 0
      %v362 = vsel %vm336, %v297, 0
      %v365 = vsel %vm336, %v299, 0
      %v368 = vsel %vm336, %v301, 0
      %v371 = vsel %vm336, %v303, 0
      %v374 = vsel %vm336, %v305, 0
      %v377 = vsel %vm336, %v307, 0
      %v380 = vsel %vm336, %v309, 0
      %v383 = vsel %vm336, %v311, 0
      %385 = vmatpush.msra.mxu0 %v327
      %386 = vmatpush.msra.mxu0 %v326
      %387 = vmatpush.msra.mxu0 %v325
      %388 = vmatpush.msra.mxu0 %v324
      %389 = vmatpush.msra.mxu0 %v323
      %390 = vmatpush.msra.mxu0 %v322
      %391 = vmatpush.msra.mxu0 %v321
      %392 = vmatpush.msra.mxu0 %v320
      %393 = vmatpush.msra.mxu0 %v319
      %394 = vmatpush.msra.mxu0 %v318
      %395 = vmatpush.msra.mxu0 %v317
      %396 = vmatpush.msra.mxu0 %v316
      %397 = vmatpush.msra.mxu0 %v315
      %398 = vmatpush.msra.mxu0 %v314
      %399 = vmatpush.msra.mxu0 %v313
      %400 = vmatpush.msra.mxu0 %v312
      %401 = vmatmul.f32.gmra.mxu0 %v280
      %v402 = vpop.f32.mrf.mxu0
      %v403 = vadd.f32 0.0, %v402
      %404 = vmatmul.f32.gmra.mxu0 %v282
      %v405 = vpop.f32.mrf.mxu0
      %v406 = vadd.f32 0.0, %v405
      %407 = vmatmul.f32.gmra.mxu0 %v284
      %v408 = vpop.f32.mrf.mxu0
      %v409 = vadd.f32 0.0, %v408
      %410 = vmatmul.f32.gmra.mxu0 %v286
      %v411 = vpop.f32.mrf.mxu0
      %v412 = vadd.f32 0.0, %v411
      %413 = vmatmul.f32.gmra.mxu0 %v288
      %v414 = vpop.f32.mrf.mxu0
      %v415 = vadd.f32 0.0, %v414
      %416 = vmatmul.f32.gmra.mxu0 %v290
      %v417 = vpop.f32.mrf.mxu0
      %v418 = vadd.f32 0.0, %v417
      %419 = vmatmul.f32.gmra.mxu0 %v292
      %v420 = vpop.f32.mrf.mxu0
      %v421 = vadd.f32 0.0, %v420
      %422 = vmatmul.f32.gmra.mxu0 %v294
      %v423 = vpop.f32.mrf.mxu0
      %v424 = vadd.f32 0.0, %v423
      %425 = vmatmul.f32.gmra.mxu0 %v296
      %v426 = vpop.f32.mrf.mxu0
      %v427 = vadd.f32 0.0, %v426
      %428 = vmatmul.f32.gmra.mxu0 %v298
      %v429 = vpop.f32.mrf.mxu0
      %v430 = vadd.f32 0.0, %v429
      %431 = vmatmul.f32.gmra.mxu0 %v300
      %v432 = vpop.f32.mrf.mxu0
      %v433 = vadd.f32 0.0, %v432
      %434 = vmatmul.f32.gmra.mxu0 %v302
      %v435 = vpop.f32.mrf.mxu0
      %v436 = vadd.f32 0.0, %v435
      %437 = vmatmul.f32.gmra.mxu0 %v304
      %v438 = vpop.f32.mrf.mxu0
      %v439 = vadd.f32 0.0, %v438
      %440 = vmatmul.f32.gmra.mxu0 %v306
      %v441 = vpop.f32.mrf.mxu0
      %v442 = vadd.f32 0.0, %v441
      %443 = vmatmul.f32.gmra.mxu0 %v308
      %v444 = vpop.f32.mrf.mxu0
      %v445 = vadd.f32 0.0, %v444
      %446 = vmatmul.f32.gmra.mxu0 %v310
      %v447 = vpop.f32.mrf.mxu0
      %v448 = vadd.f32 0.0, %v447
      %449 = vdwg.mxu0
      %450 = vmatpush.msra.mxu0 0.0
      %451 = vmatpush.msra.mxu0 0.0
      %452 = vmatpush.msra.mxu0 0.0
      %453 = vmatpush.msra.mxu0 0.0
      %454 = vmatpush.msra.mxu0 0.0
      %455 = vmatpush.msra.mxu0 0.0
      %456 = vmatpush.msra.mxu0 0.0
      %457 = vmatpush.msra.mxu0 0.0
      %458 = vmatpush.msra.mxu0 %v335
      %459 = vmatpush.msra.mxu0 %v334
      %460 = vmatpush.msra.mxu0 %v333
      %461 = vmatpush.msra.mxu0 %v332
      %462 = vmatpush.msra.mxu0 %v331
      %463 = vmatpush.msra.mxu0 %v330
      %464 = vmatpush.msra.mxu0 %v329
      %465 = vmatpush.msra.mxu0 %v328
      %466 = vmatmul.f32.gmra.mxu0 %v338
      %v467 = vpop.f32.mrf.mxu0
      %v468 = vadd.f32 %v403, %v467
      %469 = vmatmul.f32.gmra.mxu0 %v341
      %v470 = vpop.f32.mrf.mxu0
      %v471 = vadd.f32 %v406, %v470
      %472 = vmatmul.f32.gmra.mxu0 %v344
      %v473 = vpop.f32.mrf.mxu0
      %v474 = vadd.f32 %v409, %v473
      %475 = vmatmul.f32.gmra.mxu0 %v347
      %v476 = vpop.f32.mrf.mxu0
      %v477 = vadd.f32 %v412, %v476
      %478 = vmatmul.f32.gmra.mxu0 %v350
      %v479 = vpop.f32.mrf.mxu0
      %v480 = vadd.f32 %v415, %v479
      %481 = vmatmul.f32.gmra.mxu0 %v353
      %v482 = vpop.f32.mrf.mxu0
      %v483 = vadd.f32 %v418, %v482
      %484 = vmatmul.f32.gmra.mxu0 %v356
      %v485 = vpop.f32.mrf.mxu0
      %v486 = vadd.f32 %v421, %v485
      %487 = vmatmul.f32.gmra.mxu0 %v359
      %v488 = vpop.f32.mrf.mxu0
      %v489 = vadd.f32 %v424, %v488
      %490 = vmatmul.f32.gmra.mxu0 %v362
      %v491 = vpop.f32.mrf.mxu0
      %v492 = vadd.f32 %v427, %v491
      %493 = vmatmul.f32.gmra.mxu0 %v365
      %v494 = vpop.f32.mrf.mxu0
      %v495 = vadd.f32 %v430, %v494
      %496 = vmatmul.f32.gmra.mxu0 %v368
      %v497 = vpop.f32.mrf.mxu0
      %v498 = vadd.f32 %v433, %v497
      %499 = vmatmul.f32.gmra.mxu0 %v371
      %v500 = vpop.f32.mrf.mxu0
      %v501 = vadd.f32 %v436, %v500
      %502 = vmatmul.f32.gmra.mxu0 %v374
      %v503 = vpop.f32.mrf.mxu0
      %v504 = vadd.f32 %v439, %v503
      %505 = vmatmul.f32.gmra.mxu0 %v377
      %v506 = vpop.f32.mrf.mxu0
      %v507 = vadd.f32 %v442, %v506
      %508 = vmatmul.f32.gmra.mxu0 %v380
      %v509 = vpop.f32.mrf.mxu0
      %v510 = vadd.f32 %v445, %v509
      %511 = vmatmul.f32.gmra.mxu0 %v383
      %v512 = vpop.f32.mrf.mxu0
      %v513 = vadd.f32 %v448, %v512
      %514 = vdwg.mxu0
      %v515 = vmax.f32 %v468, 0.0
      %v516 = vmax.f32 %v471, 0.0
      %v517 = vmax.f32 %v474, 0.0
      %v518 = vmax.f32 %v477, 0.0
      %v519 = vmax.f32 %v480, 0.0
      %v520 = vmax.f32 %v483, 0.0
      %v521 = vmax.f32 %v486, 0.0
      %v522 = vmax.f32 %v489, 0.0
      %v523 = vmax.f32 %v492, 0.0
      %v524 = vmax.f32 %v495, 0.0
      %v525 = vmax.f32 %v498, 0.0
      %v526 = vmax.f32 %v501, 0.0
      %v527 = vmax.f32 %v504, 0.0
      %v528 = vmax.f32 %v507, 0.0
      %v529 = vmax.f32 %v510, 0.0
      %v530 = vmax.f32 %v513, 0.0
      %531 = vst.msk [vmem:[%s266] sm:$0xff] %vm336, %v515
      %532 = vst.msk [vmem:[%s266 + $0x8] sm:$0xff] %vm336, %v516
      %533 = vst.msk [vmem:[%s266 + $0x10] sm:$0xff] %vm336, %v517
      %534 = vst.msk [vmem:[%s266 + $0x18] sm:$0xff] %vm336, %v518
      %535 = vst.msk [vmem:[%s266 + $0x20] sm:$0xff] %vm336, %v519
      %536 = vst.msk [vmem:[%s266 + $0x28] sm:$0xff] %vm336, %v520
      %537 = vst.msk [vmem:[%s266 + $0x30] sm:$0xff] %vm336, %v521
      %538 = vst.msk [vmem:[%s266 + $0x38] sm:$0xff] %vm336, %v522
      %539 = vst.msk [vmem:[%s266 + $0x40] sm:$0xff] %vm336, %v523
      %540 = vst.msk [vmem:[%s266 + $0x48] sm:$0xff] %vm336, %v524
      %541 = vst.msk [vmem:[%s266 + $0x50] sm:$0xff] %vm336, %v525
      %542 = vst.msk [vmem:[%s266 + $0x58] sm:$0xff] %vm336, %v526
      %543 = vst.msk [vmem:[%s266 + $0x60] sm:$0xff] %vm336, %v527
      %544 = vst.msk [vmem:[%s266 + $0x68] sm:$0xff] %vm336, %v528
      %545 = vst.msk [vmem:[%s266 + $0x70] sm:$0xff] %vm336, %v529
      %546 = vst.msk [vmem:[%s266 + $0x78] sm:$0xff] %vm336, %v530
      %v547 = vld [vmem:[%s260] sm:$0xff]
      %v548 = vld [vmem:[%s260 + $0x8] sm:$0xff]
      %v549 = vld [vmem:[%s260 + $0x10] sm:$0xff]
      %v550 = vld [vmem:[%s260 + $0x18] sm:$0xff]
      %v551 = vld [vmem:[%s260 + $0x20] sm:$0xff]
      %v552 = vld [vmem:[%s260 + $0x28] sm:$0xff]
      %v553 = vld [vmem:[%s260 + $0x30] sm:$0xff]
      %v554 = vld [vmem:[%s260 + $0x38] sm:$0xff]
      %v555 = vld [vmem:[%s260 + $0x40] sm:$0xff]
      %v556 = vld [vmem:[%s260 + $0x48] sm:$0xff]
      %v557 = vld [vmem:[%s260 + $0x50] sm:$0xff]
      %v558 = vld [vmem:[%s260 + $0x58] sm:$0xff]
      %v559 = vld [vmem:[%s260 + $0x60] sm:$0xff]
      %v560 = vld [vmem:[%s260 + $0x68] sm:$0xff]
      %v561 = vld [vmem:[%s260 + $0x70] sm:$0xff]
      %v562 = vld [vmem:[%s260 + $0x78] sm:$0xff]
      %v563 = vmul.f32 %v468, 1.442695
      %v564 = vpow.pop %v563
      %v565 = vmul.f32 %v471, 1.442695
      %v566 = vpow.pop %v565
      %v567 = vmul.f32 %v474, 1.442695
      %v568 = vpow.pop %v567
      %v569 = vmul.f32 %v477, 1.442695
      %v570 = vpow.pop %v569
      %v571 = vmul.f32 %v480, 1.442695
      %v572 = vpow.pop %v571
      %v573 = vmul.f32 %v483, 1.442695
      %v574 = vpow.pop %v573
      %v575 = vmul.f32 %v486, 1.442695
      %v576 = vpow.pop %v575
      %v577 = vmul.f32 %v489, 1.442695
      %v578 = vpow.pop %v577
      %v579 = vmul.f32 %v492, 1.442695
      %v580 = vpow.pop %v579
      %v581 = vmul.f32 %v495, 1.442695
      %v582 = vpow.pop %v581
      %v583 = vmul.f32 %v498, 1.442695
      %v584 = vpow.pop %v583
      %v585 = vmul.f32 %v501, 1.442695
      %v586 = vpow.pop %v585
      %v587 = vmul.f32 %v504, 1.442695
      %v588 = vpow.pop %v587
      %v589 = vmul.f32 %v507, 1.442695
      %v590 = vpow.pop %v589
      %v591 = vmul.f32 %v510, 1.442695
      %v592 = vpow.pop %v591
      %v593 = vmul.f32 %v513, 1.442695
      %v594 = vpow.pop %v593
      %611 = vrot.lane.b32.xlu0 %v564, 32
      %v612 = vpop.permute.xlu0 %611
      %613 = vrot.lane.b32.xlu0 %v566, 32
      %v614 = vpop.permute.xlu0 %613
      %615 = vrot.lane.b32.xlu0 %v568, 32
      %v616 = vpop.permute.xlu0 %615
      %617 = vrot.lane.b32.xlu0 %v570, 32
      %v618 = vpop.permute.xlu0 %617
      %619 = vrot.lane.b32.xlu0 %v572, 32
      %v620 = vpop.permute.xlu0 %619
      %621 = vrot.lane.b32.xlu0 %v574, 32
      %v622 = vpop.permute.xlu0 %621
      %623 = vrot.lane.b32.xlu0 %v576, 32
      %v624 = vpop.permute.xlu0 %623
      %625 = vrot.lane.b32.xlu0 %v578, 32
      %v626 = vpop.permute.xlu0 %625
      %627 = vrot.lane.b32.xlu0 %v580, 32
      %v628 = vpop.permute.xlu0 %627
      %629 = vrot.lane.b32.xlu0 %v582, 32
      %v630 = vpop.permute.xlu0 %629
      %631 = vrot.lane.b32.xlu0 %v584, 32
      %v632 = vpop.permute.xlu0 %631
      %633 = vrot.lane.b32.xlu0 %v586, 32
      %v634 = vpop.permute.xlu0 %633
      %635 = vrot.lane.b32.xlu0 %v588, 32
      %v636 = vpop.permute.xlu0 %635
      %637 = vrot.lane.b32.xlu0 %v590, 32
      %v638 = vpop.permute.xlu0 %637
      %639 = vrot.lane.b32.xlu0 %v592, 32
      %v640 = vpop.permute.xlu0 %639
      %641 = vrot.lane.b32.xlu0 %v594, 32
      %v642 = vpop.permute.xlu0 %641
      %v659 = vmul.f32 %v547, %v612
      %v660 = vmul.f32 %v548, %v614
      %v661 = vmul.f32 %v549, %v616
      %v662 = vmul.f32 %v550, %v618
      %v663 = vmul.f32 %v551, %v620
      %v664 = vmul.f32 %v552, %v622
      %v665 = vmul.f32 %v553, %v624
      %v666 = vmul.f32 %v554, %v626
      %v667 = vmul.f32 %v555, %v628
      %v668 = vmul.f32 %v556, %v630
      %v669 = vmul.f32 %v557, %v632
      %v670 = vmul.f32 %v558, %v634
      %v671 = vmul.f32 %v559, %v636
      %v672 = vmul.f32 %v560, %v638
      %v673 = vmul.f32 %v561, %v640
      %v674 = vmul.f32 %v562, %v642
      %691 = vrot.lane.b32.xlu0 %v468, 64
      %v692 = vpop.permute.xlu0 %691
      %693 = vrot.lane.b32.xlu0 %v471, 64
      %v694 = vpop.permute.xlu0 %693
      %695 = vrot.lane.b32.xlu0 %v474, 64
      %v696 = vpop.permute.xlu0 %695
      %697 = vrot.lane.b32.xlu0 %v477, 64
      %v698 = vpop.permute.xlu0 %697
      %699 = vrot.lane.b32.xlu0 %v480, 64
      %v700 = vpop.permute.xlu0 %699
      %701 = vrot.lane.b32.xlu0 %v483, 64
      %v702 = vpop.permute.xlu0 %701
      %703 = vrot.lane.b32.xlu0 %v486, 64
      %v704 = vpop.permute.xlu0 %703
      %705 = vrot.lane.b32.xlu0 %v489, 64
      %v706 = vpop.permute.xlu0 %705
      %707 = vrot.lane.b32.xlu0 %v492, 64
      %v708 = vpop.permute.xlu0 %707
      %709 = vrot.lane.b32.xlu0 %v495, 64
      %v710 = vpop.permute.xlu0 %709
      %711 = vrot.lane.b32.xlu0 %v498, 64
      %v712 = vpop.permute.xlu0 %711
      %713 = vrot.lane.b32.xlu0 %v501, 64
      %v714 = vpop.permute.xlu0 %713
      %715 = vrot.lane.b32.xlu0 %v504, 64
      %v716 = vpop.permute.xlu0 %715
      %717 = vrot.lane.b32.xlu0 %v507, 64
      %v718 = vpop.permute.xlu0 %717
      %719 = vrot.lane.b32.xlu0 %v510, 64
      %v720 = vpop.permute.xlu0 %719
      %721 = vrot.lane.b32.xlu0 %v513, 64
      %v722 = vpop.permute.xlu0 %721
      %v739 = vadd.f32 %v659, %v692
      %v740 = vadd.f32 %v660, %v694
      %v741 = vadd.f32 %v661, %v696
      %v742 = vadd.f32 %v662, %v698
      %v743 = vadd.f32 %v663, %v700
      %v744 = vadd.f32 %v664, %v702
      %v745 = vadd.f32 %v665, %v704
      %v746 = vadd.f32 %v666, %v706
      %v747 = vadd.f32 %v667, %v708
      %v748 = vadd.f32 %v668, %v710
      %v749 = vadd.f32 %v669, %v712
      %v750 = vadd.f32 %v670, %v714
      %v751 = vadd.f32 %v671, %v716
      %v752 = vadd.f32 %v672, %v718
      %v753 = vadd.f32 %v673, %v720
      %v754 = vadd.f32 %v674, %v722
      %vm755 = vcmask 261120
      %756 = vst.msk [vmem:[%s272] sm:$0xff] %vm755, %v739
      %757 = vst.msk [vmem:[%s272 + $0x8] sm:$0xff] %vm755, %v740
      %758 = vst.msk [vmem:[%s272 + $0x10] sm:$0xff] %vm755, %v741
      %759 = vst.msk [vmem:[%s272 + $0x18] sm:$0xff] %vm755, %v742
      %760 = vst.msk [vmem:[%s272 + $0x20] sm:$0xff] %vm755, %v743
      %761 = vst.msk [vmem:[%s272 + $0x28] sm:$0xff] %vm755, %v744
      %762 = vst.msk [vmem:[%s272 + $0x30] sm:$0xff] %vm755, %v745
      %763 = vst.msk [vmem:[%s272 + $0x38] sm:$0xff] %vm755, %v746
      %764 = vst.msk [vmem:[%s272 + $0x40] sm:$0xff] %vm755, %v747
      %765 = vst.msk [vmem:[%s272 + $0x48] sm:$0xff] %vm755, %v748
      %766 = vst.msk [vmem:[%s272 + $0x50] sm:$0xff] %vm755, %v749
      %767 = vst.msk [vmem:[%s272 + $0x58] sm:$0xff] %vm755, %v750
      %768 = vst.msk [vmem:[%s272 + $0x60] sm:$0xff] %vm755, %v751
      %769 = vst.msk [vmem:[%s272 + $0x68] sm:$0xff] %vm755, %v752
      %770 = vst.msk [vmem:[%s272 + $0x70] sm:$0xff] %vm755, %v753
      %771 = vst.msk [vmem:[%s272 + $0x78] sm:$0xff] %vm755, %v754
      %v772 = vlaneseq
      %v773 = vand.u32 %v772, 127
      %vm774 = vcmp.ge.s32.totalorder %v773, 31
      %v775 = vsub.f32 0.0, %v739
      %v776 = vsub.f32 0.0, %v740
      %v777 = vsub.f32 0.0, %v741
      %v778 = vsub.f32 0.0, %v742
      %v779 = vsub.f32 0.0, %v743
      %v780 = vsub.f32 0.0, %v744
      %v781 = vsub.f32 0.0, %v745
      %v782 = vsub.f32 0.0, %v746
      %v783 = vsub.f32 0.0, %v747
      %v784 = vsub.f32 0.0, %v748
      %v785 = vsub.f32 0.0, %v749
      %v786 = vsub.f32 0.0, %v750
      %v787 = vsub.f32 0.0, %v751
      %v788 = vsub.f32 0.0, %v752
      %v789 = vsub.f32 0.0, %v753
      %v790 = vsub.f32 0.0, %v754
      %v791 = vsel %vm774, 1, 0
      %vm792 = vcmp.eq.s32.totalorder %v791, 1
      %v793 = vsel %vm792, %v775, %v739
      %v794 = vsel %vm792, %v776, %v740
      %v795 = vsel %vm792, %v777, %v741
      %v796 = vsel %vm792, %v778, %v742
      %v797 = vsel %vm792, %v779, %v743
      %v798 = vsel %vm792, %v780, %v744
      %v799 = vsel %vm792, %v781, %v745
      %v800 = vsel %vm792, %v782, %v746
      %v801 = vsel %vm792, %v783, %v747
      %v802 = vsel %vm792, %v784, %v748
      %v803 = vsel %vm792, %v785, %v749
      %v804 = vsel %vm792, %v786, %v750
      %v805 = vsel %vm792, %v787, %v751
      %v806 = vsel %vm792, %v788, %v752
      %v807 = vsel %vm792, %v789, %v753
      %v808 = vsel %vm792, %v790, %v754
      %809 = vst.msk [vmem:[%s278] sm:$0xff] %vm755, %v793
      %810 = vst.msk [vmem:[%s278 + $0x8] sm:$0xff] %vm755, %v794
      %811 = vst.msk [vmem:[%s278 + $0x10] sm:$0xff] %vm755, %v795
      %812 = vst.msk [vmem:[%s278 + $0x18] sm:$0xff] %vm755, %v796
      %813 = vst.msk [vmem:[%s278 + $0x20] sm:$0xff] %vm755, %v797
      %814 = vst.msk [vmem:[%s278 + $0x28] sm:$0xff] %vm755, %v798
      %815 = vst.msk [vmem:[%s278 + $0x30] sm:$0xff] %vm755, %v799
      %816 = vst.msk [vmem:[%s278 + $0x38] sm:$0xff] %vm755, %v800
      %817 = vst.msk [vmem:[%s278 + $0x40] sm:$0xff] %vm755, %v801
      %818 = vst.msk [vmem:[%s278 + $0x48] sm:$0xff] %vm755, %v802
      %819 = vst.msk [vmem:[%s278 + $0x50] sm:$0xff] %vm755, %v803
      %820 = vst.msk [vmem:[%s278 + $0x58] sm:$0xff] %vm755, %v804
      %821 = vst.msk [vmem:[%s278 + $0x60] sm:$0xff] %vm755, %v805
      %822 = vst.msk [vmem:[%s278 + $0x68] sm:$0xff] %vm755, %v806
      %823 = vst.msk [vmem:[%s278 + $0x70] sm:$0xff] %vm755, %v807
      %824 = vst.msk [vmem:[%s278 + $0x78] sm:$0xff] %vm755, %v808
      %s825 = smul.u32 16, %s17
      %p826 = scmp.lt.s32.totalorder %s825, 31
      %s827 = scalar_select %p826, %s825, 31
      %s828 = smul.addr %s827, 8
      %s829 = scalar_lea.vmem %s3, %s828
      %s830 = smul.u32 16, %s17
      %p831 = scmp.lt.s32.totalorder %s830, 31
      %s832 = scalar_select %p831, %s830, 31
      %s833 = smul.addr %s832, 8
      %s834 = scalar_lea.vmem %s4, %s833
      %s835 = smul.u32 16, %s17
      %p836 = scmp.lt.s32.totalorder %s835, 31
      %s837 = scalar_select %p836, %s835, 31
      %s838 = smul.addr %s837, 8
      %s839 = scalar_lea.vmem %s5, %s838
      // Predicated region
      $region33: #{vbgae_adj_forward.5} parent=31 // pred_check
        %p840 = pneg %p108
      $region34: #{vbgae_adj_forward.5} parent=31 // pred_check_branch
        %842 = sbr.rel (%p840) target = $region36
      $region35: #{vbgae_adj_forward.5} parent=31 // pred_region
        %s843 = smul.u32 16, %s17
      $region36: #{vbgae_adj_forward.5} parent=31 // pred_fallthru
        _
      // Predicated region
      $region37: #{vbgae_adj_forward.5} parent=31 // pred_check
        %p844 = pneg %p134
      $region38: #{vbgae_adj_forward.5} parent=31 // pred_check_branch
        %846 = sbr.rel (%p844) target = $region40
      $region39: #{vbgae_adj_forward.5} parent=31 // pred_region
        %s847 = smul.u32 16, %s17
      $region40: #{vbgae_adj_forward.5} parent=31 // pred_fallthru
        _
      // Predicated region
      $region41: #{vbgae_adj_forward.5} parent=31 // pred_check
        %p848 = pneg %p160
      $region42: #{vbgae_adj_forward.5} parent=31 // pred_check_branch
        %850 = sbr.rel (%p848) target = $region44
      $region43: #{vbgae_adj_forward.5} parent=31 // pred_region
        %s851 = smul.u32 16, %s17
      $region44: #{vbgae_adj_forward.5} parent=31 // pred_fallthru
        _
    $region32: #{vbgae_adj_forward.5} parent=5 // pred_fallthru
      _
    %p852 = scmp.le.s32.totalorder 2, %s12
    // Predicated region
    $region45: #{vbgae_adj_forward.5} parent=5 // pred_check
      %p853 = pneg %p852
    $region46: #{vbgae_adj_forward.5} parent=5 // pred_check_branch
      %855 = sbr.rel (%p853) target = $region48
    $region47: #{vbgae_adj_forward.5} parent=5 // pred_region
      %s856 = ssub.s32 %s12, 2
      // Predicated region
      $region49: #{vbgae_adj_forward.5} parent=47 // pred_check
        %p857 = pneg %p114
      $region50: #{vbgae_adj_forward.5} parent=47 // pred_check_branch
        %859 = sbr.rel (%p857) target = $region52
      $region51: #{vbgae_adj_forward.5} parent=47 // pred_region
        %s860 = smul.u32 16, %s18
        %p861 = scmp.lt.s32.totalorder %s860, 31
        %s862 = scalar_select %p861, %s860, 31
        %s863 = smul.addr %s862, 8
        %s864 = scalar_lea.vmem %s3, %s863
      $region52: #{vbgae_adj_forward.5} parent=47 // pred_fallthru
        _
      // Predicated region
      $region53: #{vbgae_adj_forward.5} parent=47 // pred_check
        %p865 = pneg %p140
      $region54: #{vbgae_adj_forward.5} parent=47 // pred_check_branch
        %867 = sbr.rel (%p865) target = $region56
      $region55: #{vbgae_adj_forward.5} parent=47 // pred_region
        %s868 = smul.u32 16, %s18
        %p869 = scmp.lt.s32.totalorder %s868, 31
        %s870 = scalar_select %p869, %s868, 31
        %s871 = smul.addr %s870, 8
        %s872 = scalar_lea.vmem %s4, %s871
      $region56: #{vbgae_adj_forward.5} parent=47 // pred_fallthru
        _
      // Predicated region
      $region57: #{vbgae_adj_forward.5} parent=47 // pred_check
        %p873 = pneg %p166
      $region58: #{vbgae_adj_forward.5} parent=47 // pred_check_branch
        %875 = sbr.rel (%p873) target = $region60
      $region59: #{vbgae_adj_forward.5} parent=47 // pred_region
        %s876 = smul.u32 16, %s18
        %p877 = scmp.lt.s32.totalorder %s876, 31
        %s878 = scalar_select %p877, %s876, 31
        %s879 = smul.addr %s878, 8
        %s880 = scalar_lea.vmem %s5, %s879
      $region60: #{vbgae_adj_forward.5} parent=47 // pred_fallthru
        _
    $region48: #{vbgae_adj_forward.5} parent=5 // pred_fallthru
      _
  $region6: #{vbgae_adj_forward.5} parent=0 // loop_footer
    %s16 = sadd.s32 1, %s12
  $region7: #{vbgae_adj_forward.5} parent=0 // loop_footer_branch
    %11 = sbr.rel target = $region3
  $region8: #{vbgae_adj_forward.5} parent=0 // loop_exit
    _

// kernel: vbgae_adj_forward.7
$region0: #{vbgae_adj_forward.7}
  #allocation0 [shape = 'u32[]', space=smem, size = 0x4, offset = 0x4, fixed_abs, tag = 'smem constant byte address 0x4 - core index']
  #allocation1 [shape = 'u32[72,128]{1,0:T(1,128)}', space=vmem, size = 0x9000, scoped, tag = 'internal scratch']
  %s0 = inlined_call_operand.vmem [shape: f32[256,32], index: 0, kind: input, shape index: {}]
  %s1 = inlined_call_operand.vmem [shape: f32[192,32], index: 1, kind: input, shape index: {}]
  %s2 = inlined_call_operand.vmem [shape: f32[256,192], index: 2, kind: output, shape index: {}]
  %s3 = sld [smem:[#allocation0]]
  $region75: #{vbgae_adj_forward.7} parent=0
    _
  %s5 = ssub.s32 1, %s3
  %s6 = scalar_select 0, %s5, %s3
  $region1: #{vbgae_adj_forward.7} parent=0
    #allocation2 [shape = 'u8[131072]{0}', space=vmem, size = 0x20000, scoped, tag = 'output window, operand 0']
    loop: start=0, step=1, limit=6
    $region2: #{vbgae_adj_forward.7} parent=1 // loop_pre_header
      _
    $region3: #{vbgae_adj_forward.7} parent=1 // loop_header
      %s8 = sphi 0, %s12
      %p9 = scmp.ge.s32.totalorder %s8, 6
      %s15 = sphi 0, %s27
      %s16 = sphi 0, %s23
      %s17 = sphi 0, %s15
      %s18 = sphi 0, %s16
      %s19 = sphi 0, %s17
      %s20 = sphi 0, %s18
      %s30 = sphi 0, %s32
      %s33 = sphi 0, %s30
      %s34 = sphi 0, %s33
      %s50 = sphi 0, %s34
      %s56 = sphi 0, %s58
      %s59 = sphi 0, %s56
      %s60 = sphi 0, %s59
      %s76 = sphi 0, %s60
      %s84 = sphi 0, %s86
      %s87 = sphi 0, %s84
      %s88 = sphi 0, %s87
      %s104 = sphi 0, %s88
    $region4: #{vbgae_adj_forward.7} parent=1 // loop_header_branch
      %11 = sbr.rel (%p9) target = $region8
    $region5: #{vbgae_adj_forward.7} parent=1 // loop_body
      %s13 = ssub.s32 %s8, 1
      %s14 = ssub.s32 %s8, 2
      %s21 = sadd.s32 1, %s16
      %p22 = scmp.ge.s32.totalorder %s21, 2
      %s23 = scalar_select %p22, 0, %s21
      %s24 = sadd.s32 1, %s15
      %s25 = scalar_select %p22, %s24, %s15
      %p26 = scmp.ge.s32.totalorder %s25, 2
      %s27 = scalar_select %p26, 0, %s25
      %s28 = ssub.s32 %s15, %s27
      %p29 = scmp.eq.s32.totalorder %s28, 0
      %s31 = sadd.s32 %s30, 1
      %s32 = scalar_select %p29, %s30, %s31
      %p35 = pneg %p29
      %p36 = scmp.eq.s32.totalorder %s8, 3
      %p37 = por %p35, %p36
      %p38 = scmp.ne.s32.totalorder %s30, %s33
      %p39 = scmp.eq.s32.totalorder %s8, 0
      %p40 = por %p38, %p39
      %p41 = scmp.ne.s32.totalorder %s30, %s33
      %p42 = scmp.eq.s32.totalorder %s13, 3
      %p43 = por %p41, %p42
      %p44 = scmp.ne.s32.totalorder %s33, %s34
      %p45 = scmp.eq.s32.totalorder %s13, 0
      %p46 = por %p44, %p45
      %p47 = scmp.ne.s32.totalorder %s33, %s34
      %p48 = scmp.eq.s32.totalorder %s14, 3
      %p49 = por %p47, %p48
      %p51 = scmp.ne.s32.totalorder %s34, %s50
      %p52 = scmp.eq.s32.totalorder %s14, 0
      %p53 = por %p51, %p52
      %s54 = ssub.s32 %s16, %s23
      %p55 = scmp.eq.s32.totalorder %s54, 0
      %s57 = sadd.s32 %s56, 1
      %s58 = scalar_select %p55, %s56, %s57
      %p61 = pneg %p55
      %p62 = scmp.eq.s32.totalorder %s8, 3
      %p63 = por %p61, %p62
      %p64 = scmp.ne.s32.totalorder %s56, %s59
      %p65 = scmp.eq.s32.totalorder %s8, 0
      %p66 = por %p64, %p65
      %p67 = scmp.ne.s32.totalorder %s56, %s59
      %p68 = scmp.eq.s32.totalorder %s13, 3
      %p69 = por %p67, %p68
      %p70 = scmp.ne.s32.totalorder %s59, %s60
      %p71 = scmp.eq.s32.totalorder %s13, 0
      %p72 = por %p70, %p71
      %p73 = scmp.ne.s32.totalorder %s59, %s60
      %p74 = scmp.eq.s32.totalorder %s14, 3
      %p75 = por %p73, %p74
      %p77 = scmp.ne.s32.totalorder %s60, %s76
      %p78 = scmp.eq.s32.totalorder %s14, 0
      %p79 = por %p77, %p78
      %s80 = ssub.s32 %s15, %s27
      %s81 = ssub.s32 %s16, %s23
      %s82 = sor.u32 %s80, %s81
      %p83 = scmp.eq.s32.totalorder %s82, 0
      %s85 = sadd.s32 %s84, 1
      %s86 = scalar_select %p83, %s84, %s85
      %p89 = pneg %p83
      %p90 = scmp.eq.s32.totalorder %s8, 3
      %p91 = por %p89, %p90
      %p92 = scmp.ne.s32.totalorder %s84, %s87
      %p93 = scmp.eq.s32.totalorder %s8, 0
      %p94 = por %p92, %p93
      %p95 = scmp.ne.s32.totalorder %s84, %s87
      %p96 = scmp.eq.s32.totalorder %s13, 3
      %p97 = por %p95, %p96
      %p98 = scmp.ne.s32.totalorder %s87, %s88
      %p99 = scmp.eq.s32.totalorder %s13, 0
      %p100 = por %p98, %p99
      %p101 = scmp.ne.s32.totalorder %s87, %s88
      %p102 = scmp.eq.s32.totalorder %s14, 3
      %p103 = por %p101, %p102
      %p105 = scmp.ne.s32.totalorder %s88, %s104
      %p106 = scmp.eq.s32.totalorder %s14, 0
      %p107 = por %p105, %p106
      %p108 = scmp.le.s32.totalorder 1, %s8
      %p109 = scmp.lt.s32.totalorder %s8, 5
      %p110 = pnand %p108, %p109
      %p111 = pneg %p110
      // Predicated region
      $region9: #{vbgae_adj_forward.7} parent=5 // pred_check
        _
      $region10: #{vbgae_adj_forward.7} parent=5 // pred_check_branch
        %113 = sbr.rel (%p110) target = $region12
      $region11: #{vbgae_adj_forward.7} parent=5 // pred_region
        %s114 = ssub.s32 %s8, 1
      $region12: #{vbgae_adj_forward.7} parent=5 // pred_fallthru
        _
      %p115 = scmp.lt.s32.totalorder %s8, 4
      // Predicated region
      $region13: #{vbgae_adj_forward.7} parent=5 // pred_check
        %p116 = pneg %p115
      $region14: #{vbgae_adj_forward.7} parent=5 // pred_check_branch
        %118 = sbr.rel (%p116) target = $region16
      $region15: #{vbgae_adj_forward.7} parent=5 // pred_region
        // Predicated region
        $region17: #{vbgae_adj_forward.7} parent=15 // pred_check
          %p119 = pneg %p40
        $region18: #{vbgae_adj_forward.7} parent=15 // pred_check_branch
          %121 = sbr.rel (%p119) target = $region20
        $region19: #{vbgae_adj_forward.7} parent=15 // pred_region
          %s122 = smul.u32 16, %s15
          %p123 = scmp.lt.s32.totalorder %s122, 31
          %s124 = scalar_select %p123, %s122, 31
          %s125 = smul.addr %s124, 8
          %s126 = scalar_lea.vmem %s0, %s125
          %s127 = smul.u32 16, %s15
        $region20: #{vbgae_adj_forward.7} parent=15 // pred_fallthru
          _
        // Predicated region
        $region21: #{vbgae_adj_forward.7} parent=15 // pred_check
          %p128 = pneg %p66
        $region22: #{vbgae_adj_forward.7} parent=15 // pred_check_branch
          %130 = sbr.rel (%p128) target = $region24
        $region23: #{vbgae_adj_forward.7} parent=15 // pred_region
          %s131 = smul.u32 16, %s16
          %s132 = ssub.s32 24, %s131
          %p133 = scmp.lt.s32.totalorder %s132, 16
          %s134 = scalar_select %p133, %s132, 16
          %s135 = smul.u32 8, %s134
          %p136 = scmp.lt.s32.totalorder %s131, 23
          %s137 = scalar_select %p136, %s131, 23
          %s138 = smul.addr %s137, 8
          %s139 = scalar_lea.vmem %s1, %s138
          %s140 = smul.u32 16, %s16
          %s141 = ssub.s32 24, %s140
          %p142 = scmp.lt.s32.totalorder %s141, 16
          %s143 = scalar_select %p142, %s141, 16
          %s144 = smul.u32 8, %s143
        $region24: #{vbgae_adj_forward.7} parent=15 // pred_fallthru
          _
      $region16: #{vbgae_adj_forward.7} parent=5 // pred_fallthru
        _
      %p145 = scmp.le.s32.totalorder 1, %s8
      %p146 = scmp.lt.s32.totalorder %s8, 5
      %p147 = pnand %p145, %p146
      %p148 = pneg %p147
      // Predicated region
      $region25: #{vbgae_adj_forward.7} parent=5 // pred_check
        _
      $region26: #{vbgae_adj_forward.7} parent=5 // pred_check_branch
        %150 = sbr.rel (%p147) target = $region28
      $region27: #{vbgae_adj_forward.7} parent=5 // pred_region
        %s151 = ssub.s32 %s8, 1
        %s152 = smul.u32 16, %s17
        %p153 = scmp.lt.s32.totalorder %s152, 31
        %s154 = scalar_select %p153, %s152, 31
        %s155 = smul.addr %s154, 8
        %s156 = scalar_lea.vmem %s0, %s155
        %p157 = pneg %p46
        %p158 = pneg %p43
        %s159 = smul.u32 16, %s18
        %s160 = ssub.s32 24, %s159
        %p161 = scmp.lt.s32.totalorder %s160, 16
        %s162 = scalar_select %p161, %s160, 16
        %s163 = smul.u32 8, %s162
        %p164 = scmp.lt.s32.totalorder %s159, 23
        %s165 = scalar_select %p164, %s159, 23
        %s166 = smul.addr %s165, 8
        %s167 = scalar_lea.vmem %s1, %s166
        %p168 = pneg %p72
        %p169 = pneg %p69
        %p170 = pneg %p100
        %p171 = pneg %p97
        %s172 = sand.u32 %s87, 1
        %s173 = sand.u32 %s87, 1
        %s174 = smul.addr %s173, 128
        %s175 = scalar_lea.vmem [#allocation2], %s174
        %s176 = smul.u32 16, %s17
        %p177 = scmp.lt.s32.totalorder %s176, 31
        %s178 = scalar_select %p177, %s176, 31
        %s179 = smul.addr %s178, 8
        %s180 = scalar_lea.vmem %s0, %s179
        %s181 = smul.u32 16, %s17
        %s182 = smul.u32 16, %s18
        %s183 = ssub.s32 24, %s182
        %p184 = scmp.lt.s32.totalorder %s183, 16
        %s185 = scalar_select %p184, %s183, 16
        %s186 = smul.u32 8, %s185
        %p187 = scmp.lt.s32.totalorder %s182, 23
        %s188 = scalar_select %p187, %s182, 23
        %s189 = smul.addr %s188, 8
        %s190 = scalar_lea.vmem %s1, %s189
        %s191 = smul.u32 16, %s18
        %s192 = ssub.s32 24, %s191
        %p193 = scmp.lt.s32.totalorder %s192, 16
        %s194 = scalar_select %p193, %s192, 16
        %s195 = smul.u32 8, %s194
        %s196 = smul.u32 16, %s17
        %v197 = vld [vmem:[%s180] sm:$0xff]
        %v198 = vld [vmem:[%s180 + $0x8] sm:$0xff]
        %v199 = vld [vmem:[%s180 + $0x10] sm:$0xff]
        %v200 = vld [vmem:[%s180 + $0x18] sm:$0xff]
        %v201 = vld [vmem:[%s180 + $0x20] sm:$0xff]
        %v202 = vld [vmem:[%s180 + $0x28] sm:$0xff]
        %v203 = vld [vmem:[%s180 + $0x30] sm:$0xff]
        %v204 = vld [vmem:[%s180 + $0x38] sm:$0xff]
        %v205 = vld [vmem:[%s180 + $0x40] sm:$0xff]
        %v206 = vld [vmem:[%s180 + $0x48] sm:$0xff]
        %v207 = vld [vmem:[%s180 + $0x50] sm:$0xff]
        %v208 = vld [vmem:[%s180 + $0x58] sm:$0xff]
        %v209 = vld [vmem:[%s180 + $0x60] sm:$0xff]
        %v210 = vld [vmem:[%s180 + $0x68] sm:$0xff]
        %v211 = vld [vmem:[%s180 + $0x70] sm:$0xff]
        %v212 = vld [vmem:[%s180 + $0x78] sm:$0xff]
        %v213 = vld [vmem:[%s190] sm:$0xff]
        %v214 = vld [vmem:[%s190 + $0x8] sm:$0xff]
        %v215 = vld [vmem:[%s190 + $0x10] sm:$0xff]
        %v216 = vld [vmem:[%s190 + $0x18] sm:$0xff]
        %v217 = vld [vmem:[%s190 + $0x20] sm:$0xff]
        %v218 = vld [vmem:[%s190 + $0x28] sm:$0xff]
        %v219 = vld [vmem:[%s190 + $0x30] sm:$0xff]
        %v220 = vld [vmem:[%s190 + $0x38] sm:$0xff]
        %v221 = vld [vmem:[%s190 + $0x40] sm:$0xff]
        %v222 = vld [vmem:[%s190 + $0x48] sm:$0xff]
        %v223 = vld [vmem:[%s190 + $0x50] sm:$0xff]
        %v224 = vld [vmem:[%s190 + $0x58] sm:$0xff]
        %v225 = vld [vmem:[%s190 + $0x60] sm:$0xff]
        %v226 = vld [vmem:[%s190 + $0x68] sm:$0xff]
        %v227 = vld [vmem:[%s190 + $0x70] sm:$0xff]
        %v228 = vld [vmem:[%s190 + $0x78] sm:$0xff]
        %vm229 = vcmask 261120
        %v231 = vsel %vm229, %v197, 0
        %v234 = vsel %vm229, %v198, 0
        %v237 = vsel %vm229, %v199, 0
        %v240 = vsel %vm229, %v200, 0
        %v243 = vsel %vm229, %v201, 0
        %v246 = vsel %vm229, %v202, 0
        %v249 = vsel %vm229, %v203, 0
        %v252 = vsel %vm229, %v204, 0
        %v255 = vsel %vm229, %v205, 0
        %v258 = vsel %vm229, %v206, 0
        %v261 = vsel %vm229, %v207, 0
        %v264 = vsel %vm229, %v208, 0
        %v267 = vsel %vm229, %v209, 0
        %v270 = vsel %vm229, %v210, 0
        %v273 = vsel %vm229, %v211, 0
        %v276 = vsel %vm229, %v212, 0
        %v279 = vsel %vm229, %v213, 0
        %v282 = vsel %vm229, %v214, 0
        %v285 = vsel %vm229, %v215, 0
        %v288 = vsel %vm229, %v216, 0
        %v291 = vsel %vm229, %v217, 0
        %v294 = vsel %vm229, %v218, 0
        %v297 = vsel %vm229, %v219, 0
        %v300 = vsel %vm229, %v220, 0
        %v303 = vsel %vm229, %v221, 0
        %v306 = vsel %vm229, %v222, 0
        %v309 = vsel %vm229, %v223, 0
        %v312 = vsel %vm229, %v224, 0
        %v315 = vsel %vm229, %v225, 0
        %v318 = vsel %vm229, %v226, 0
        %v321 = vsel %vm229, %v227, 0
        %v324 = vsel %vm229, %v228, 0
        %326 = vmatpush.xpose.msra.mxu0 %v324
        %327 = vmatpush.xpose.msra.mxu0 %v321
        %328 = vmatpush.xpose.msra.mxu0 %v318
        %329 = vmatpush.xpose.msra.mxu0 %v315
        %330 = vmatpush.xpose.msra.mxu0 %v312
        %331 = vmatpush.xpose.msra.mxu0 %v309
        %332 = vmatpush.xpose.msra.mxu0 %v306
        %333 = vmatpush.xpose.msra.mxu0 %v303
        %334 = vmatpush.xpose.msra.mxu0 %v300
        %335 = vmatpush.xpose.msra.mxu0 %v297
        %336 = vmatpush.xpose.msra.mxu0 %v294
        %337 = vmatpush.xpose.msra.mxu0 %v291
        %338 = vmatpush.xpose.msra.mxu0 %v288
        %339 = vmatpush.xpose.msra.mxu0 %v285
        %340 = vmatpush.xpose.msra.mxu0 %v282
        %341 = vmatpush.xpose.msra.mxu0 %v279
        %342 = vmatmul.f32.gmra.mxu0 %v231
        %v343 = vpop.f32.mrf.mxu0
        %v344 = vadd.f32 0.0, %v343
        %345 = vmatmul.f32.gmra.mxu0 %v234
        %v346 = vpop.f32.mrf.mxu0
        %v347 = vadd.f32 0.0, %v346
        %348 = vmatmul.f32.gmra.mxu0 %v237
        %v349 = vpop.f32.mrf.mxu0
        %v350 = vadd.f32 0.0, %v349
        %351 = vmatmul.f32.gmra.mxu0 %v240
        %v352 = vpop.f32.mrf.mxu0
        %v353 = vadd.f32 0.0, %v352
        %354 = vmatmul.f32.gmra.mxu0 %v243
        %v355 = vpop.f32.mrf.mxu0
        %v356 = vadd.f32 0.0, %v355
        %357 = vmatmul.f32.gmra.mxu0 %v246
        %v358 = vpop.f32.mrf.mxu0
        %v359 = vadd.f32 0.0, %v358
        %360 = vmatmul.f32.gmra.mxu0 %v249
        %v361 = vpop.f32.mrf.mxu0
        %v362 = vadd.f32 0.0, %v361
        %363 = vmatmul.f32.gmra.mxu0 %v252
        %v364 = vpop.f32.mrf.mxu0
        %v365 = vadd.f32 0.0, %v364
        %366 = vmatmul.f32.gmra.mxu0 %v255
        %v367 = vpop.f32.mrf.mxu0
        %v368 = vadd.f32 0.0, %v367
        %369 = vmatmul.f32.gmra.mxu0 %v258
        %v370 = vpop.f32.mrf.mxu0
        %v371 = vadd.f32 0.0, %v370
        %372 = vmatmul.f32.gmra.mxu0 %v261
        %v373 = vpop.f32.mrf.mxu0
        %v374 = vadd.f32 0.0, %v373
        %375 = vmatmul.f32.gmra.mxu0 %v264
        %v376 = vpop.f32.mrf.mxu0
        %v377 = vadd.f32 0.0, %v376
        %378 = vmatmul.f32.gmra.mxu0 %v267
        %v379 = vpop.f32.mrf.mxu0
        %v380 = vadd.f32 0.0, %v379
        %381 = vmatmul.f32.gmra.mxu0 %v270
        %v382 = vpop.f32.mrf.mxu0
        %v383 = vadd.f32 0.0, %v382
        %384 = vmatmul.f32.gmra.mxu0 %v273
        %v385 = vpop.f32.mrf.mxu0
        %v386 = vadd.f32 0.0, %v385
        %387 = vmatmul.f32.gmra.mxu0 %v276
        %v388 = vpop.f32.mrf.mxu0
        %v389 = vadd.f32 0.0, %v388
        %390 = vdwg.mxu0
        %v391 = vxor.u32 %v344, 2147483648
        %v392 = vxor.u32 %v347, 2147483648
        %v393 = vxor.u32 %v350, 2147483648
        %v394 = vxor.u32 %v353, 2147483648
        %v395 = vxor.u32 %v356, 2147483648
        %v396 = vxor.u32 %v359, 2147483648
        %v397 = vxor.u32 %v362, 2147483648
        %v398 = vxor.u32 %v365, 2147483648
        %v399 = vxor.u32 %v368, 2147483648
        %v400 = vxor.u32 %v371, 2147483648
        %v401 = vxor.u32 %v374, 2147483648
        %v402 = vxor.u32 %v377, 2147483648
        %v403 = vxor.u32 %v380, 2147483648
        %v404 = vxor.u32 %v383, 2147483648
        %v405 = vxor.u32 %v386, 2147483648
        %v406 = vxor.u32 %v389, 2147483648
        %v407 = vmul.f32 %v391, 1.442695
        %v408 = vpow.pop %v407
        %v409 = vmul.f32 %v392, 1.442695
        %v410 = vpow.pop %v409
        %v411 = vmul.f32 %v393, 1.442695
        %v412 = vpow.pop %v411
        %v413 = vmul.f32 %v394, 1.442695
        %v414 = vpow.pop %v413
        %v415 = vmul.f32 %v395, 1.442695
        %v416 = vpow.pop %v415
        %v417 = vmul.f32 %v396, 1.442695
        %v418 = vpow.pop %v417
        %v419 = vmul.f32 %v397, 1.442695
        %v420 = vpow.pop %v419
        %v421 = vmul.f32 %v398, 1.442695
        %v422 = vpow.pop %v421
        %v423 = vmul.f32 %v399, 1.442695
        %v424 = vpow.pop %v423
        %v425 = vmul.f32 %v400, 1.442695
        %v426 = vpow.pop %v425
        %v427 = vmul.f32 %v401, 1.442695
        %v428 = vpow.pop %v427
        %v429 = vmul.f32 %v402, 1.442695
        %v430 = vpow.pop %v429
        %v431 = vmul.f32 %v403, 1.442695
        %v432 = vpow.pop %v431
        %v433 = vmul.f32 %v404, 1.442695
        %v434 = vpow.pop %v433
        %v435 = vmul.f32 %v405, 1.442695
        %v436 = vpow.pop %v435
        %v437 = vmul.f32 %v406, 1.442695
        %v438 = vpow.pop %v437
        %v439 = vadd.f32 %v408, 1.0
        %v440 = vadd.f32 %v410, 1.0
        %v441 = vadd.f32 %v412, 1.0
        %v442 = vadd.f32 %v414, 1.0
        %v443 = vadd.f32 %v416, 1.0
        %v444 = vadd.f32 %v418, 1.0
        %v445 = vadd.f32 %v420, 1.0
        %v446 = vadd.f32 %v422, 1.0
        %v447 = vadd.f32 %v424, 1.0
        %v448 = vadd.f32 %v426, 1.0
        %v449 = vadd.f32 %v428, 1.0
        %v450 = vadd.f32 %v430, 1.0
        %v451 = vadd.f32 %v432, 1.0
        %v452 = vadd.f32 %v434, 1.0
        %v453 = vadd.f32 %v436, 1.0
        %v454 = vadd.f32 %v438, 1.0
        %v455 = vrcp.pop %v439
        %v456 = vmul.f32 %v439, %v455
        %v457 = vsub.f32 1.0, %v456
        %v458 = vmul.f32 %v455, %v457
        %v459 = vadd.f32 %v455, %v458
        %vm460 = vweird.f32 %v439
        %vm461 = vweird.f32 %v455
        %vm462 = vmor %vm460, %vm461
        %v463 = vsel %vm462, %v455, %v459
        %v464 = vand.u32 2147483647, %v439
        %vm465 = vcmp.eq.f32.partialorder %v464, 8.507059e+37
        %v466 = vand.u32 %v439, 2147483648
        %v467 = vor.u32 1.1754944e-38, %v466
        %v468 = vsel %vm465, %v467, %v463
        %v469 = vmul.f32 1.0, %v468
        %v470 = vrcp.pop %v440
        %v471 = vmul.f32 %v440, %v470
        %v472 = vsub.f32 1.0, %v471
        %v473 = vmul.f32 %v470, %v472
        %v474 = vadd.f32 %v470, %v473
        %vm475 = vweird.f32 %v440
        %vm476 = vweird.f32 %v470
        %vm477 = vmor %vm475, %vm476
        %v478 = vsel %vm477, %v470, %v474
        %v479 = vand.u32 2147483647, %v440
        %vm480 = vcmp.eq.f32.partialorder %v479, 8.507059e+37
        %v481 = vand.u32 %v440, 2147483648
        %v482 = vor.u32 1.1754944e-38, %v481
        %v483 = vsel %vm480, %v482, %v478
        %v484 = vmul.f32 1.0, %v483
        %v485 = vrcp.pop %v441
        %v486 = vmul.f32 %v441, %v485
        %v487 = vsub.f32 1.0, %v486
        %v488 = vmul.f32 %v485, %v487
        %v489 = vadd.f32 %v485, %v488
        %vm490 = vweird.f32 %v441
        %vm491 = vweird.f32 %v485
        %vm492 = vmor %vm490, %vm491
        %v493 = vsel %vm492, %v485, %v489
        %v494 = vand.u32 2147483647, %v441
        %vm495 = vcmp.eq.f32.partialorder %v494, 8.507059e+37
        %v496 = vand.u32 %v441, 2147483648
        %v497 = vor.u32 1.1754944e-38, %v496
        %v498 = vsel %vm495, %v497, %v493
        %v499 = vmul.f32 1.0, %v498
        %v500 = vrcp.pop %v442
        %v501 = vmul.f32 %v442, %v500
        %v502 = vsub.f32 1.0, %v501
        %v503 = vmul.f32 %v500, %v502
        %v504 = vadd.f32 %v500, %v503
        %vm505 = vweird.f32 %v442
        %vm506 = vweird.f32 %v500
        %vm507 = vmor %vm505, %vm506
        %v508 = vsel %vm507, %v500, %v504
        %v509 = vand.u32 2147483647, %v442
        %vm510 = vcmp.eq.f32.partialorder %v509, 8.507059e+37
        %v511 = vand.u32 %v442, 2147483648
        %v512 = vor.u32 1.1754944e-38, %v511
        %v513 = vsel %vm510, %v512, %v508
        %v514 = vmul.f32 1.0, %v513
        %v515 = vrcp.pop %v443
        %v516 = vmul.f32 %v443, %v515
        %v517 = vsub.f32 1.0, %v516
        %v518 = vmul.f32 %v515, %v517
        %v519 = vadd.f32 %v515, %v518
        %vm520 = vweird.f32 %v443
        %vm521 = vweird.f32 %v515
        %vm522 = vmor %vm520, %vm521
        %v523 = vsel %vm522, %v515, %v519
        %v524 = vand.u32 2147483647, %v443
        %vm525 = vcmp.eq.f32.partialorder %v524, 8.507059e+37
        %v526 = vand.u32 %v443, 2147483648
        %v527 = vor.u32 1.1754944e-38, %v526
        %v528 = vsel %vm525, %v527, %v523
        %v529 = vmul.f32 1.0, %v528
        %v530 = vrcp.pop %v444
        %v531 = vmul.f32 %v444, %v530
        %v532 = vsub.f32 1.0, %v531
        %v533 = vmul.f32 %v530, %v532
        %v534 = vadd.f32 %v530, %v533
        %vm535 = vweird.f32 %v444
        %vm536 = vweird.f32 %v530
        %vm537 = vmor %vm535, %vm536
        %v538 = vsel %vm537, %v530, %v534
        %v539 = vand.u32 2147483647, %v444
        %vm540 = vcmp.eq.f32.partialorder %v539, 8.507059e+37
        %v541 = vand.u32 %v444, 2147483648
        %v542 = vor.u32 1.1754944e-38, %v541
        %v543 = vsel %vm540, %v542, %v538
        %v544 = vmul.f32 1.0, %v543
        %v545 = vrcp.pop %v445
        %v546 = vmul.f32 %v445, %v545
        %v547 = vsub.f32 1.0, %v546
        %v548 = vmul.f32 %v545, %v547
        %v549 = vadd.f32 %v545, %v548
        %vm550 = vweird.f32 %v445
        %vm551 = vweird.f32 %v545
        %vm552 = vmor %vm550, %vm551
        %v553 = vsel %vm552, %v545, %v549
        %v554 = vand.u32 2147483647, %v445
        %vm555 = vcmp.eq.f32.partialorder %v554, 8.507059e+37
        %v556 = vand.u32 %v445, 2147483648
        %v557 = vor.u32 1.1754944e-38, %v556
        %v558 = vsel %vm555, %v557, %v553
        %v559 = vmul.f32 1.0, %v558
        %v560 = vrcp.pop %v446
        %v561 = vmul.f32 %v446, %v560
        %v562 = vsub.f32 1.0, %v561
        %v563 = vmul.f32 %v560, %v562
        %v564 = vadd.f32 %v560, %v563
        %vm565 = vweird.f32 %v446
        %vm566 = vweird.f32 %v560
        %vm567 = vmor %vm565, %vm566
        %v568 = vsel %vm567, %v560, %v564
        %v569 = vand.u32 2147483647, %v446
        %vm570 = vcmp.eq.f32.partialorder %v569, 8.507059e+37
        %v571 = vand.u32 %v446, 2147483648
        %v572 = vor.u32 1.1754944e-38, %v571
        %v573 = vsel %vm570, %v572, %v568
        %v574 = vmul.f32 1.0, %v573
        %v575 = vrcp.pop %v447
        %v576 = vmul.f32 %v447, %v575
        %v577 = vsub.f32 1.0, %v576
        %v578 = vmul.f32 %v575, %v577
        %v579 = vadd.f32 %v575, %v578
        %vm580 = vweird.f32 %v447
        %vm581 = vweird.f32 %v575
        %vm582 = vmor %vm580, %vm581
        %v583 = vsel %vm582, %v575, %v579
        %v584 = vand.u32 2147483647, %v447
        %vm585 = vcmp.eq.f32.partialorder %v584, 8.507059e+37
        %v586 = vand.u32 %v447, 2147483648
        %v587 = vor.u32 1.1754944e-38, %v586
        %v588 = vsel %vm585, %v587, %v583
        %v589 = vmul.f32 1.0, %v588
        %v590 = vrcp.pop %v448
        %v591 = vmul.f32 %v448, %v590
        %v592 = vsub.f32 1.0, %v591
        %v593 = vmul.f32 %v590, %v592
        %v594 = vadd.f32 %v590, %v593
        %vm595 = vweird.f32 %v448
        %vm596 = vweird.f32 %v590
        %vm597 = vmor %vm595, %vm596
        %v598 = vsel %vm597, %v590, %v594
        %v599 = vand.u32 2147483647, %v448
        %vm600 = vcmp.eq.f32.partialorder %v599, 8.507059e+37
        %v601 = vand.u32 %v448, 2147483648
        %v602 = vor.u32 1.1754944e-38, %v601
        %v603 = vsel %vm600, %v602, %v598
        %v604 = vmul.f32 1.0, %v603
        %v605 = vrcp.pop %v449
        %v606 = vmul.f32 %v449, %v605
        %v607 = vsub.f32 1.0, %v606
        %v608 = vmul.f32 %v605, %v607
        %v609 = vadd.f32 %v605, %v608
        %vm610 = vweird.f32 %v449
        %vm611 = vweird.f32 %v605
        %vm612 = vmor %vm610, %vm611
        %v613 = vsel %vm612, %v605, %v609
        %v614 = vand.u32 2147483647, %v449
        %vm615 = vcmp.eq.f32.partialorder %v614, 8.507059e+37
        %v616 = vand.u32 %v449, 2147483648
        %v617 = vor.u32 1.1754944e-38, %v616
        %v618 = vsel %vm615, %v617, %v613
        %v619 = vmul.f32 1.0, %v618
        %v620 = vrcp.pop %v450
        %v621 = vmul.f32 %v450, %v620
        %v622 = vsub.f32 1.0, %v621
        %v623 = vmul.f32 %v620, %v622
        %v624 = vadd.f32 %v620, %v623
        %vm625 = vweird.f32 %v450
        %vm626 = vweird.f32 %v620
        %vm627 = vmor %vm625, %vm626
        %v628 = vsel %vm627, %v620, %v624
        %v629 = vand.u32 2147483647, %v450
        %vm630 = vcmp.eq.f32.partialorder %v629, 8.507059e+37
        %v631 = vand.u32 %v450, 2147483648
        %v632 = vor.u32 1.1754944e-38, %v631
        %v633 = vsel %vm630, %v632, %v628
        %v634 = vmul.f32 1.0, %v633
        %v635 = vrcp.pop %v451
        %v636 = vmul.f32 %v451, %v635
        %v637 = vsub.f32 1.0, %v636
        %v638 = vmul.f32 %v635, %v637
        %v639 = vadd.f32 %v635, %v638
        %vm640 = vweird.f32 %v451
        %vm641 = vweird.f32 %v635
        %vm642 = vmor %vm640, %vm641
        %v643 = vsel %vm642, %v635, %v639
        %v644 = vand.u32 2147483647, %v451
        %vm645 = vcmp.eq.f32.partialorder %v644, 8.507059e+37
        %v646 = vand.u32 %v451, 2147483648
        %v647 = vor.u32 1.1754944e-38, %v646
        %v648 = vsel %vm645, %v647, %v643
        %v649 = vmul.f32 1.0, %v648
        %v650 = vrcp.pop %v452
        %v651 = vmul.f32 %v452, %v650
        %v652 = vsub.f32 1.0, %v651
        %v653 = vmul.f32 %v650, %v652
        %v654 = vadd.f32 %v650, %v653
        %vm655 = vweird.f32 %v452
        %vm656 = vweird.f32 %v650
        %vm657 = vmor %vm655, %vm656
        %v658 = vsel %vm657, %v650, %v654
        %v659 = vand.u32 2147483647, %v452
        %vm660 = vcmp.eq.f32.partialorder %v659, 8.507059e+37
        %v661 = vand.u32 %v452, 2147483648
        %v662 = vor.u32 1.1754944e-38, %v661
        %v663 = vsel %vm660, %v662, %v658
        %v664 = vmul.f32 1.0, %v663
        %v665 = vrcp.pop %v453
        %v666 = vmul.f32 %v453, %v665
        %v667 = vsub.f32 1.0, %v666
        %v668 = vmul.f32 %v665, %v667
        %v669 = vadd.f32 %v665, %v668
        %vm670 = vweird.f32 %v453
        %vm671 = vweird.f32 %v665
        %vm672 = vmor %vm670, %vm671
        %v673 = vsel %vm672, %v665, %v669
        %v674 = vand.u32 2147483647, %v453
        %vm675 = vcmp.eq.f32.partialorder %v674, 8.507059e+37
        %v676 = vand.u32 %v453, 2147483648
        %v677 = vor.u32 1.1754944e-38, %v676
        %v678 = vsel %vm675, %v677, %v673
        %v679 = vmul.f32 1.0, %v678
        %v680 = vrcp.pop %v454
        %v681 = vmul.f32 %v454, %v680
        %v682 = vsub.f32 1.0, %v681
        %v683 = vmul.f32 %v680, %v682
        %v684 = vadd.f32 %v680, %v683
        %vm685 = vweird.f32 %v454
        %vm686 = vweird.f32 %v680
        %vm687 = vmor %vm685, %vm686
        %v688 = vsel %vm687, %v680, %v684
        %v689 = vand.u32 2147483647, %v454
        %vm690 = vcmp.eq.f32.partialorder %v689, 8.507059e+37
        %v691 = vand.u32 %v454, 2147483648
        %v692 = vor.u32 1.1754944e-38, %v691
        %v693 = vsel %vm690, %v692, %v688
        %v694 = vmul.f32 1.0, %v693
        %695 = vst [vmem:[%s175] sm:$0xff] %v469
        %696 = vst [vmem:[%s175 + $0x8] sm:$0xff] %v484
        %697 = vst [vmem:[%s175 + $0x10] sm:$0xff] %v499
        %698 = vst [vmem:[%s175 + $0x18] sm:$0xff] %v514
        %699 = vst [vmem:[%s175 + $0x20] sm:$0xff] %v529
        %700 = vst [vmem:[%s175 + $0x28] sm:$0xff] %v544
        %701 = vst [vmem:[%s175 + $0x30] sm:$0xff] %v559
        %702 = vst [vmem:[%s175 + $0x38] sm:$0xff] %v574
        %703 = vst [vmem:[%s175 + $0x40] sm:$0xff] %v589
        %704 = vst [vmem:[%s175 + $0x48] sm:$0xff] %v604
        %705 = vst [vmem:[%s175 + $0x50] sm:$0xff] %v619
        %706 = vst [vmem:[%s175 + $0x58] sm:$0xff] %v634
        %707 = vst [vmem:[%s175 + $0x60] sm:$0xff] %v649
        %708 = vst [vmem:[%s175 + $0x68] sm:$0xff] %v664
        %709 = vst [vmem:[%s175 + $0x70] sm:$0xff] %v679
        %710 = vst [vmem:[%s175 + $0x78] sm:$0xff] %v694
        %s711 = sand.u32 %s87, 1
        %s712 = sand.u32 %s87, 1
        %s713 = smul.addr %s712, 128
        %s714 = scalar_lea.vmem [#allocation2], %s713
        // Predicated region
        $region29: #{vbgae_adj_forward.7} parent=27 // pred_check
          %p715 = pneg %p97
        $region30: #{vbgae_adj_forward.7} parent=27 // pred_check_branch
          %717 = sbr.rel (%p715) target = $region32
        $region31: #{vbgae_adj_forward.7} parent=27 // pred_region
          %s718 = smul.u32 16, %s17
          %s719 = smul.addr %s718, 2
          %s720 = sadd.s32 %s18, %s719
          %s721 = smul.addr %s720, 8
          %s722 = scalar_lea.vmem %s2, %s721
          // Predicated region
          $region33: #{vbgae_adj_forward.7} parent=31 // pred_check
            _
          $region34: #{vbgae_adj_forward.7} parent=31 // pred_check_branch
            %724 = sbr.rel (0) target = $region36
          $region35: #{vbgae_adj_forward.7} parent=31 // pred_region
            // Predicated region
            $region37: #{vbgae_adj_forward.7} parent=35 // pred_check
              _
            $region38: #{vbgae_adj_forward.7} parent=35 // pred_check_branch
              %726 = sbr.rel (0) target = $region40
            $region39: #{vbgae_adj_forward.7} parent=35 // pred_region
              // Predicated region
              $region52: #{vbgae_adj_forward.7} parent=39 // pred_check
                _
              $region53: #{vbgae_adj_forward.7} parent=39 // pred_check_branch
                %772 = sbr.rel (0) target = $region55
              $region54: #{vbgae_adj_forward.7} parent=39 // pred_region
                loop: start=0, step=1, limit=1
                $region56: #{vbgae_adj_forward.7} parent=54 // loop_pre_header
                  _
                $region57: #{vbgae_adj_forward.7} parent=54 // loop_header
                  %s774 = sphi 0, %s778
                  %p775 = scmp.ge.s32.totalorder %s774, 1
                  %s779 = sphi %s714, %s714
                  %s780 = sphi %s722, %s722
                $region58: #{vbgae_adj_forward.7} parent=54 // loop_header_branch
                  %777 = sbr.rel (%p775) target = $region62
                $region59: #{vbgae_adj_forward.7} parent=54 // loop_body
                  %v781 = vld [vmem:[%s779] sm:$0xff]
                  %782 = vst [vmem:[%s780] sm:$0xff] %v781
                  %v783 = vld [vmem:[%s779 + $0x8] sm:$0xff]
                  %784 = vst [vmem:[%s780 + $0x10] sm:$0xff] %v783
                  %v785 = vld [vmem:[%s779 + $0x10] sm:$0xff]
                  %786 = vst [vmem:[%s780 + $0x20] sm:$0xff] %v785
                  %v787 = vld [vmem:[%s779 + $0x18] sm:$0xff]
                  %788 = vst [vmem:[%s780 + $0x30] sm:$0xff] %v787
                  %v789 = vld [vmem:[%s779 + $0x20] sm:$0xff]
                  %790 = vst [vmem:[%s780 + $0x40] sm:$0xff] %v789
                  %v791 = vld [vmem:[%s779 + $0x28] sm:$0xff]
                  %792 = vst [vmem:[%s780 + $0x50] sm:$0xff] %v791
                  %v793 = vld [vmem:[%s779 + $0x30] sm:$0xff]
                  %794 = vst [vmem:[%s780 + $0x60] sm:$0xff] %v793
                  %v795 = vld [vmem:[%s779 + $0x38] sm:$0xff]
                  %796 = vst [vmem:[%s780 + $0x70] sm:$0xff] %v795
                  %v797 = vld [vmem:[%s779 + $0x40] sm:$0xff]
                  %798 = vst [vmem:[%s780 + $0x80] sm:$0xff] %v797
                  %v799 = vld [vmem:[%s779 + $0x48] sm:$0xff]
                  %800 = vst [vmem:[%s780 + $0x90] sm:$0xff] %v799
                  %v801 = vld [vmem:[%s779 + $0x50] sm:$0xff]
                  %802 = vst [vmem:[%s780 + $0xa0] sm:$0xff] %v801
                  %v803 = vld [vmem:[%s779 + $0x58] sm:$0xff]
                  %804 = vst [vmem:[%s780 + $0xb0] sm:$0xff] %v803
                  %v805 = vld [vmem:[%s779 + $0x60] sm:$0xff]
                  %806 = vst [vmem:[%s780 + $0xc0] sm:$0xff] %v805
                  %v807 = vld [vmem:[%s779 + $0x68] sm:$0xff]
                  %808 = vst [vmem:[%s780 + $0xd0] sm:$0xff] %v807
                  %v809 = vld [vmem:[%s779 + $0x70] sm:$0xff]
                  %810 = vst [vmem:[%s780 + $0xe0] sm:$0xff] %v809
                  %v811 = vld [vmem:[%s779 + $0x78] sm:$0xff]
                  %812 = vst [vmem:[%s780 + $0xf0] sm:$0xff] %v811
                $region60: #{vbgae_adj_forward.7} parent=54 // loop_footer
                  %s778 = sadd.s32 1, %s774
                $region61: #{vbgae_adj_forward.7} parent=54 // loop_footer_branch
                  %773 = sbr.rel target = $region57
                $region62: #{vbgae_adj_forward.7} parent=54 // loop_exit
                  _
              $region55: #{vbgae_adj_forward.7} parent=39 // pred_fallthru
                _
              // Predicated region
              $region63: #{vbgae_adj_forward.7} parent=39 // pred_check
                _
              $region64: #{vbgae_adj_forward.7} parent=39 // pred_check_branch
                %814 = sbr.rel target = $region66
              $region65: #{vbgae_adj_forward.7} parent=39 // pred_region
                _
              $region66: #{vbgae_adj_forward.7} parent=39 // pred_fallthru
                _
            $region40: #{vbgae_adj_forward.7} parent=35 // pred_fallthru
              _
            // Predicated region
            $region41: #{vbgae_adj_forward.7} parent=35 // pred_check
              _
            $region42: #{vbgae_adj_forward.7} parent=35 // pred_check_branch
              %728 = sbr.rel target = $region44
            $region43: #{vbgae_adj_forward.7} parent=35 // pred_region
              %s730 = ssub.s32 256, 1
              loop: start=0, step=1, limit=1
              $region45: #{vbgae_adj_forward.7} parent=43 // loop_pre_header
                _
              $region46: #{vbgae_adj_forward.7} parent=43 // loop_header
                %s732 = sphi 0, %s736
                %p733 = scmp.ge.s32.totalorder %s732, 1
                %s737 = sphi %s714, %s714
                %s738 = sphi %s722, %s722
              $region47: #{vbgae_adj_forward.7} parent=43 // loop_header_branch
                %735 = sbr.rel (%p733) target = $region51
              $region48: #{vbgae_adj_forward.7} parent=43 // loop_body
                %v739 = vld [vmem:[%s737] sm:%s730]
                %740 = vst [vmem:[%s738] sm:%s730] %v739
                %v741 = vld [vmem:[%s737 + $0x8] sm:%s730]
                %742 = vst [vmem:[%s738 + $0x10] sm:%s730] %v741
                %v743 = vld [vmem:[%s737 + $0x10] sm:%s730]
                %744 = vst [vmem:[%s738 + $0x20] sm:%s730] %v743
                %v745 = vld [vmem:[%s737 + $0x18] sm:%s730]
                %746 = vst [vmem:[%s738 + $0x30] sm:%s730] %v745
                %v747 = vld [vmem:[%s737 + $0x20] sm:%s730]
                %748 = vst [vmem:[%s738 + $0x40] sm:%s730] %v747
                %v749 = vld [vmem:[%s737 + $0x28] sm:%s730]
                %750 = vst [vmem:[%s738 + $0x50] sm:%s730] %v749
                %v751 = vld [vmem:[%s737 + $0x30] sm:%s730]
                %752 = vst [vmem:[%s738 + $0x60] sm:%s730] %v751
                %v753 = vld [vmem:[%s737 + $0x38] sm:%s730]
                %754 = vst [vmem:[%s738 + $0x70] sm:%s730] %v753
                %v755 = vld [vmem:[%s737 + $0x40] sm:%s730]
                %756 = vst [vmem:[%s738 + $0x80] sm:%s730] %v755
                %v757 = vld [vmem:[%s737 + $0x48] sm:%s730]
                %758 = vst [vmem:[%s738 + $0x90] sm:%s730] %v757
                %v759 = vld [vmem:[%s737 + $0x50] sm:%s730]
                %760 = vst [vmem:[%s738 + $0xa0] sm:%s730] %v759
                %v761 = vld [vmem:[%s737 + $0x58] sm:%s730]
                %762 = vst [vmem:[%s738 + $0xb0] sm:%s730] %v761
                %v763 = vld [vmem:[%s737 + $0x60] sm:%s730]
                %764 = vst [vmem:[%s738 + $0xc0] sm:%s730] %v763
                %v765 = vld [vmem:[%s737 + $0x68] sm:%s730]
                %766 = vst [vmem:[%s738 + $0xd0] sm:%s730] %v765
                %v767 = vld [vmem:[%s737 + $0x70] sm:%s730]
                %768 = vst [vmem:[%s738 + $0xe0] sm:%s730] %v767
                %v769 = vld [vmem:[%s737 + $0x78] sm:%s730]
                %770 = vst [vmem:[%s738 + $0xf0] sm:%s730] %v769
              $region49: #{vbgae_adj_forward.7} parent=43 // loop_footer
                %s736 = sadd.s32 1, %s732
              $region50: #{vbgae_adj_forward.7} parent=43 // loop_footer_branch
                %731 = sbr.rel target = $region46
              $region51: #{vbgae_adj_forward.7} parent=43 // loop_exit
                _
            $region44: #{vbgae_adj_forward.7} parent=35 // pred_fallthru
              _
          $region36: #{vbgae_adj_forward.7} parent=31 // pred_fallthru
            _
          %815 = vnop
        $region32: #{vbgae_adj_forward.7} parent=27 // pred_fallthru
          _
      $region28: #{vbgae_adj_forward.7} parent=5 // pred_fallthru
        _
      %p816 = scmp.le.s32.totalorder 2, %s8
      // Predicated region
      $region67: #{vbgae_adj_forward.7} parent=5 // pred_check
        %p817 = pneg %p816
      $region68: #{vbgae_adj_forward.7} parent=5 // pred_check_branch
        %819 = sbr.rel (%p817) target = $region70
      $region69: #{vbgae_adj_forward.7} parent=5 // pred_region
        %s820 = ssub.s32 %s8, 2
        // Predicated region
        $region71: #{vbgae_adj_forward.7} parent=69 // pred_check
          %p821 = pneg %p103
        $region72: #{vbgae_adj_forward.7} parent=69 // pred_check_branch
          %823 = sbr.rel (%p821) target = $region74
        $region73: #{vbgae_adj_forward.7} parent=69 // pred_region
          %s824 = sand.u32 %s88, 1
          %s825 = sand.u32 %s88, 1
          %s826 = smul.addr %s825, 128
          %s827 = scalar_lea.vmem [#allocation2], %s826
        $region74: #{vbgae_adj_forward.7} parent=69 // pred_fallthru
          _
      $region70: #{vbgae_adj_forward.7} parent=5 // pred_fallthru
        _
    $region6: #{vbgae_adj_forward.7} parent=1 // loop_footer
      %s12 = sadd.s32 1, %s8
    $region7: #{vbgae_adj_forward.7} parent=1 // loop_footer_branch
      %7 = sbr.rel target = $region3
    $region8: #{vbgae_adj_forward.7} parent=1 // loop_exit
      _

</llo_original>
